<compile_context>
chip_gen: v5e
topology: v5e:2x2
jax: 0.10.0
libtpu: 0.0.40
codegen_flags: <defaults>
</compile_context>

<pallas_src>
import math
import functools

import jax
import jax.numpy as jnp
from jax.experimental import pallas as pl
from jax.experimental.pallas import tpu as pltpu


def _round_up(x, m):
    return (x + m - 1) // m * m


def _mha_kernel(q_ref, k_ref, v_ref, mq_ref, mk_ref,
                wq_ref, bq_ref, wk_ref, bk_ref, wv_ref, bv_ref,
                wo_ref, bo_ref, out_ref,
                *, num_heads, hidden_dim, causal, mxu_dtype):
    f32 = jnp.float32

    q = q_ref[0].astype(mxu_dtype)        # (TQ, E)
    k = k_ref[0].astype(mxu_dtype)        # (S,  E)
    v = v_ref[0].astype(mxu_dtype)        # (S,  E)

    # Fused projections for all heads at once: (., E) @ (E, Dp) -> (., Dp)
    Qh = jnp.dot(q, wq_ref[...], preferred_element_type=f32) + bq_ref[...]
    Kh = jnp.dot(k, wk_ref[...], preferred_element_type=f32) + bk_ref[...]
    Vh = jnp.dot(v, wv_ref[...], preferred_element_type=f32) + bv_ref[...]

    tq = Qh.shape[0]
    s = Kh.shape[0]

    # Attention mask built in-kernel (never shipped through HBM):
    #   am[i, j] = mask[i] * mask[j]  (* tril when causal)
    am = mq_ref[0] * mk_ref[0]            # (TQ,1)*(1,S) -> (TQ,S), float {0,1}
    if causal:
        q_pos = (jax.lax.broadcasted_iota(jnp.int32, (tq, s), 0)
                 + pl.program_id(1) * tq)
        k_pos = jax.lax.broadcasted_iota(jnp.int32, (tq, s), 1)
        am = am * (k_pos <= q_pos).astype(f32)

    approx_recip = mxu_dtype != jnp.float32   # exact 1/x in the f32 check path
    scale = 1.0 / math.sqrt(hidden_dim)

    heads = []
    for h in range(num_heads):
        lo = h * hidden_dim
        hi = lo + hidden_dim
        qh = Qh[:, lo:hi].astype(mxu_dtype)          # (TQ, hd)
        kh = Kh[:, lo:hi].astype(mxu_dtype)          # (S,  hd)
        vh = Vh[:, lo:hi].astype(mxu_dtype)          # (S,  hd)

        # scores = qh @ kh^T without materializing an explicit transpose.
        scores = jax.lax.dot_general(
            qh, kh, dimension_numbers=(((1,), (1,)), ((), ())),
            preferred_element_type=f32) * scale       # (TQ, S)

        # AllenNLP util.masked_softmax(dim=-1), memory_efficient=False:
        #   p = softmax(scores * m); p = p * m; p = p / (p.sum + 1e-13)
        # folded into one normalization (algebraically identical):
        #   p = e*m / (sum(e*m) + 1e-13 * sum(e))
        sm = scores * am
        e = jnp.exp(sm - jnp.max(sm, axis=-1, keepdims=True))
        em = e * am
        denom = (jnp.sum(em, axis=-1, keepdims=True)
                 + 1e-13 * jnp.sum(e, axis=-1, keepdims=True))
        p = em * pl.reciprocal(denom, approx=approx_recip)

        heads.append(jnp.dot(p.astype(mxu_dtype), vh,
                             preferred_element_type=f32))   # (TQ, hd)

    concat = jnp.concatenate(heads, axis=-1)                 # (TQ, H*hd)
    out = jnp.dot(concat.astype(mxu_dtype), wo_ref[...],
                  preferred_element_type=f32) + bo_ref[...]  # (TQ, out_p)
    out_ref[0] = out.astype(out_ref.dtype)


def multihead_attention(Q, K, V, params, mask=None,
                        mask_following_timesteps=False,
                        mxu_dtype=jnp.bfloat16):
    """Q, K, V: (B, S, E) float32; mask: (B, S) bool or None."""
    B, S, E = Q.shape
    wq, bq, wk, bk, wv, bv, wo, bo = params
    num_heads, _, hidden_dim = wq.shape
    output_dim = wo.shape[-1]
    Dh = num_heads * hidden_dim

    # ---- query-dim tiling & sequence padding -------------------------------
    if S <= 256:
        tq = _round_up(S, 8)
        S_p = tq
    else:
        tq = 256
        S_p = _round_up(S, tq)

    if mask is None:
        mask = jnp.ones((B, S), dtype=bool)
    if S_p != S:
        pad = S_p - S
        Q = jnp.pad(Q, ((0, 0), (0, pad), (0, 0)))
        K = jnp.pad(K, ((0, 0), (0, pad), (0, 0)))
        V = jnp.pad(V, ((0, 0), (0, pad), (0, 0)))
        mask = jnp.pad(mask, ((0, 0), (0, pad)))    # pads are masked out

    mask_f = mask.astype(jnp.float32)
    mq = mask_f[:, :, None]       # (B, S_p, 1) — query-side mask
    mk = mask_f[:, None, :]       # (B, 1, S_p) — key-side mask

    # ---- fuse + pad weights (lane-dense projections & output) -------------
    Dp = _round_up(Dh, 128)
    out_p = _round_up(output_dim, 128)

    def fuse_w(w):    # (H, E, hd) -> (E, H*hd), zero-padded to Dp columns
        wf = jnp.transpose(w, (1, 0, 2)).reshape(E, Dh)
        return jnp.pad(wf, ((0, 0), (0, Dp - Dh))).astype(mxu_dtype)

    def fuse_b(b):    # (H, 1, hd) -> (1, H*hd), zero-padded to Dp (kept f32)
        bf = b.reshape(1, Dh)
        return jnp.pad(bf, ((0, 0), (0, Dp - Dh))).astype(jnp.float32)

    wq_f, wk_f, wv_f = fuse_w(wq), fuse_w(wk), fuse_w(wv)
    bq_f, bk_f, bv_f = fuse_b(bq), fuse_b(bk), fuse_b(bv)
    wo_f = jnp.pad(wo.reshape(Dh, output_dim),
                   ((0, 0), (0, out_p - output_dim))).astype(mxu_dtype)
    bo_f = jnp.pad(bo.reshape(1, output_dim),
                   ((0, 0), (0, out_p - output_dim))).astype(jnp.float32)

    kernel = functools.partial(
        _mha_kernel, num_heads=num_heads, hidden_dim=hidden_dim,
        causal=bool(mask_following_timesteps), mxu_dtype=mxu_dtype)

    n_qt = S_p // tq
    const = lambda b, qt: (0, 0)   # grid-constant: weights DMA'd once, resident

    out = pl.pallas_call(
        kernel,
        out_shape=jax.ShapeDtypeStruct((B, S_p, out_p), jnp.float32),
        grid_spec=pltpu.PrefetchScalarGridSpec(
            num_scalar_prefetch=0,
            grid=(B, n_qt),
            in_specs=[
                pl.BlockSpec((1, tq, E), lambda b, qt: (b, qt, 0)),   # Q tile
                pl.BlockSpec((1, S_p, E), lambda b, qt: (b, 0, 0)),   # K
                pl.BlockSpec((1, S_p, E), lambda b, qt: (b, 0, 0)),   # V
                pl.BlockSpec((1, tq, 1), lambda b, qt: (b, qt, 0)),   # mask (query rows)
                pl.BlockSpec((1, 1, S_p), lambda b, qt: (b, 0, 0)),   # mask (key cols)
                pl.BlockSpec((E, Dp), const),                         # Wq (fused)
                pl.BlockSpec((1, Dp), const),                         # bq
                pl.BlockSpec((E, Dp), const),                         # Wk
                pl.BlockSpec((1, Dp), const),                         # bk
                pl.BlockSpec((E, Dp), const),                         # Wv
                pl.BlockSpec((1, Dp), const),                         # bv
                pl.BlockSpec((Dh, out_p), const),                     # Wout
                pl.BlockSpec((1, out_p), const),                      # bout
            ],
            out_specs=pl.BlockSpec((1, tq, out_p), lambda b, qt: (b, qt, 0)),
        ),
        # NOTE: for very large S, raise vmem_limit_bytes here (stay < 64 MiB on
        # v7x); at these block sizes the default scoped VMEM limit is ample.
        compiler_params=pltpu.CompilerParams(
            dimension_semantics=("parallel", "parallel")),
    )(Q, K, V, mq, mk, wq_f, bq_f, wk_f, bk_f, wv_f, bv_f, wo_f, bo_f)

    return out[:, :S, :output_dim]


def init_params(key, input_dim, hidden_dim, output_dim, num_heads):
    """Deterministic synthetic init (same shapes as the PyTorch module)."""
    ks = jax.random.split(key, 8)
    s_in = 1.0 / math.sqrt(input_dim)
    s_out = 1.0 / math.sqrt(num_heads * hidden_dim)

    def u(k, shape, s):
        return jax.random.uniform(k, shape, minval=-s, maxval=s, dtype=jnp.float32)

    # Per-head projection weights stored already transposed: (H, E, hidden)
    wq = u(ks[0], (num_heads, input_dim, hidden_dim), s_in)
    wk = u(ks[1], (num_heads, input_dim, hidden_dim), s_in)
    wv = u(ks[2], (num_heads, input_dim, hidden_dim), s_in)
    bq = u(ks[3], (num_heads, 1, hidden_dim), s_in)
    bk = u(ks[4], (num_heads, 1, hidden_dim), s_in)
    bv = u(ks[5], (num_heads, 1, hidden_dim), s_in)
    # Output linear: torch weight (out, H*hidden); we keep W^T split per head.
    wo = u(ks[6], (num_heads * hidden_dim, output_dim), s_out).reshape(
        num_heads, hidden_dim, output_dim)
    bo = u(ks[7], (1, output_dim), s_out)
    return (wq, bq, wk, bk, wv, bv, wo, bo)


def reference_forward(Q, K, V, params, mask, mask_following_timesteps):
    """Pure-JAX reference replicating the PyTorch forward."""
    wq, bq, wk, bk, wv, bv, wo, bo = params
    num_heads, _, hidden_dim = wq.shape
    B, S, _ = Q.shape
    if mask is None:
        mask = jnp.ones((B, S), dtype=bool)
    am = (mask[:, :, None] & mask[:, None, :])
    if mask_following_timesteps:
        am = am & jnp.tril(jnp.ones((S, S), dtype=bool))[None]
    am = am.astype(jnp.float32)

    heads = []
    for h in range(num_heads):
        Qh = Q @ wq[h] + bq[h]
        Kh = K @ wk[h] + bk[h]
        Vh = V @ wv[h] + bv[h]
        scores = jnp.einsum("bqd,bkd->bqk", Qh, Kh) / math.sqrt(hidden_dim)
        p = jax.nn.softmax(scores * am, axis=2)
        p = p * am
        p = p / (jnp.sum(p, axis=2, keepdims=True) + 1e-13)
        heads.append(jnp.einsum("bqk,bkd->bqd", p, Vh))
    concat = jnp.concatenate(heads, axis=2)
    wo_full = wo.reshape(num_heads * hidden_dim, -1)
    return concat @ wo_full + bo


if __name__ == "__main__":
    B, S, E = 2, 8, 16          # batch, seq, input_dim
    hidden_dim, num_heads, output_dim = 32, 3, 32

    key = jax.random.PRNGKey(0)
    kq, kk, kv, kp = jax.random.split(key, 4)
    Q = jax.random.normal(kq, (B, S, E), dtype=jnp.float32)
    K = jax.random.normal(kk, (B, S, E), dtype=jnp.float32)
    V = jax.random.normal(kv, (B, S, E), dtype=jnp.float32)
    # Sequence mask: batch 0 fully valid, batch 1 has last 2 timesteps padded.
    mask = jnp.array([[True] * S, [True] * 6 + [False] * 2])

    params = init_params(kp, E, hidden_dim, output_dim, num_heads)

    # 1) f32-MXU mode: bit-level correctness check vs the PyTorch-equivalent
    #    reference (both non-causal and causal/tril paths).
    for causal in (False, True):
        out = multihead_attention(Q, K, V, params, mask=mask,
                                  mask_following_timesteps=causal,
                                  mxu_dtype=jnp.float32)
        out = jax.block_until_ready(out)
        ref = reference_forward(Q, K, V, params, mask, causal)
        assert out.shape == (B, S, output_dim)
        assert jnp.allclose(out, ref, rtol=1e-4, atol=1e-4), \
            f"f32 mismatch vs reference (causal={causal})"

    # 2) default performance mode (bf16 MXU operands, f32 accumulation):
    #    sanity-check against the f32 reference with a bf16-appropriate bound.
    out_bf16 = multihead_attention(Q, K, V, params, mask=mask,
                                   mask_following_timesteps=False)
    out_bf16 = jax.block_until_ready(out_bf16)
    ref = reference_forward(Q, K, V, params, mask, False)
    assert out_bf16.shape == (B, S, output_dim)
    assert jnp.allclose(out_bf16, ref, rtol=1e-1, atol=1e-1), \
        "bf16 path diverged from reference"

    print("KERNEL_OK")
</pallas_src>

<mosaic_0001>
module attributes {stable_mosaic.version = 11 : i64} {
  func.func @_mha_kernel(%arg0: i32, %arg1: i32, %arg2: memref<1x8x16xf32, #tpu.memory_space<vmem>>, %arg3: memref<1x8x16xf32, #tpu.memory_space<vmem>>, %arg4: memref<1x8x16xf32, #tpu.memory_space<vmem>>, %arg5: memref<1x8x1xf32, #tpu.memory_space<vmem>>, %arg6: memref<1x1x8xf32, #tpu.memory_space<vmem>>, %arg7: memref<16x128xf32, #tpu.memory_space<vmem>>, %arg8: memref<1x128xf32, #tpu.memory_space<vmem>>, %arg9: memref<16x128xf32, #tpu.memory_space<vmem>>, %arg10: memref<1x128xf32, #tpu.memory_space<vmem>>, %arg11: memref<16x128xf32, #tpu.memory_space<vmem>>, %arg12: memref<1x128xf32, #tpu.memory_space<vmem>>, %arg13: memref<96x128xf32, #tpu.memory_space<vmem>>, %arg14: memref<1x128xf32, #tpu.memory_space<vmem>>, %arg15: memref<1x8x128xf32, #tpu.memory_space<vmem>>) attributes {dimension_semantics = [#tpu.dimension_semantics<parallel>, #tpu.dimension_semantics<parallel>], iteration_bounds = array<i64: 2, 1>, scalar_prefetch = 0 : i64, scratch_operands = 0 : i64, tpu.core_type = #tpu.core_type<tc>, window_params = [{transform_indices = @transform_0, window_bounds = array<i64: 1, 8, 16>}, {transform_indices = @transform_1, window_bounds = array<i64: 1, 8, 16>}, {transform_indices = @transform_2, window_bounds = array<i64: 1, 8, 16>}, {transform_indices = @transform_3, window_bounds = array<i64: 1, 8, 1>}, {transform_indices = @transform_4, window_bounds = array<i64: 1, 1, 8>}, {pipeline_mode = #tpu.pipeline_mode<synchronous>, transform_indices = @transform_5, window_bounds = array<i64: 16, 128>}, {pipeline_mode = #tpu.pipeline_mode<synchronous>, transform_indices = @transform_6, window_bounds = array<i64: 1, 128>}, {pipeline_mode = #tpu.pipeline_mode<synchronous>, transform_indices = @transform_7, window_bounds = array<i64: 16, 128>}, {pipeline_mode = #tpu.pipeline_mode<synchronous>, transform_indices = @transform_8, window_bounds = array<i64: 1, 128>}, {pipeline_mode = #tpu.pipeline_mode<synchronous>, transform_indices = @transform_9, window_bounds = array<i64: 16, 128>}, {pipeline_mode = #tpu.pipeline_mode<synchronous>, transform_indices = @transform_10, window_bounds = array<i64: 1, 128>}, {pipeline_mode = #tpu.pipeline_mode<synchronous>, transform_indices = @transform_11, window_bounds = array<i64: 96, 128>}, {pipeline_mode = #tpu.pipeline_mode<synchronous>, transform_indices = @transform_12, window_bounds = array<i64: 1, 128>}, {transform_indices = @transform_13, window_bounds = array<i64: 1, 8, 128>}]} {
    %c0 = arith.constant 0 : index
    %c0_0 = arith.constant 0 : index
    %c0_1 = arith.constant 0 : index
    %0 = vector.load %arg2[%c0, %c0_0, %c0_1] : memref<1x8x16xf32, #tpu.memory_space<vmem>>, vector<1x8x16xf32>
    %1 = vector.shape_cast %0 : vector<1x8x16xf32> to vector<8x16xf32>
    %c0_2 = arith.constant 0 : index
    %c0_3 = arith.constant 0 : index
    %c0_4 = arith.constant 0 : index
    %2 = vector.load %arg3[%c0_2, %c0_3, %c0_4] : memref<1x8x16xf32, #tpu.memory_space<vmem>>, vector<1x8x16xf32>
    %3 = vector.shape_cast %2 : vector<1x8x16xf32> to vector<8x16xf32>
    %c0_5 = arith.constant 0 : index
    %c0_6 = arith.constant 0 : index
    %c0_7 = arith.constant 0 : index
    %4 = vector.load %arg4[%c0_5, %c0_6, %c0_7] : memref<1x8x16xf32, #tpu.memory_space<vmem>>, vector<1x8x16xf32>
    %5 = vector.shape_cast %4 : vector<1x8x16xf32> to vector<8x16xf32>
    %c0_8 = arith.constant 0 : index
    %c0_9 = arith.constant 0 : index
    %6 = vector.load %arg7[%c0_8, %c0_9] : memref<16x128xf32, #tpu.memory_space<vmem>>, vector<16x128xf32>
    %cst = arith.constant dense<0.000000e+00> : vector<8x128xf32>
    %7 = tpu.matmul %1, %6, %cst {dimension_numbers = #tpu.dot_dimension_numbers<[1], [0], [0], [1], [0, 0, 1, 1], [], []>} : vector<8x16xf32>, vector<16x128xf32>, vector<8x128xf32> -> vector<8x128xf32>
    %c0_10 = arith.constant 0 : index
    %c0_11 = arith.constant 0 : index
    %8 = vector.load %arg8[%c0_10, %c0_11] : memref<1x128xf32, #tpu.memory_space<vmem>>, vector<1x128xf32>
    %9 = vector.broadcast %8 : vector<1x128xf32> to vector<8x128xf32>
    %10 = arith.addf %7, %9 : vector<8x128xf32>
    %c0_12 = arith.constant 0 : index
    %c0_13 = arith.constant 0 : index
    %11 = vector.load %arg9[%c0_12, %c0_13] : memref<16x128xf32, #tpu.memory_space<vmem>>, vector<16x128xf32>
    %cst_14 = arith.constant dense<0.000000e+00> : vector<8x128xf32>
    %12 = tpu.matmul %3, %11, %cst_14 {dimension_numbers = #tpu.dot_dimension_numbers<[1], [0], [0], [1], [0, 0, 1, 1], [], []>} : vector<8x16xf32>, vector<16x128xf32>, vector<8x128xf32> -> vector<8x128xf32>
    %c0_15 = arith.constant 0 : index
    %c0_16 = arith.constant 0 : index
    %13 = vector.load %arg10[%c0_15, %c0_16] : memref<1x128xf32, #tpu.memory_space<vmem>>, vector<1x128xf32>
    %14 = vector.broadcast %13 : vector<1x128xf32> to vector<8x128xf32>
    %15 = arith.addf %12, %14 : vector<8x128xf32>
    %c0_17 = arith.constant 0 : index
    %c0_18 = arith.constant 0 : index
    %16 = vector.load %arg11[%c0_17, %c0_18] : memref<16x128xf32, #tpu.memory_space<vmem>>, vector<16x128xf32>
    %cst_19 = arith.constant dense<0.000000e+00> : vector<8x128xf32>
    %17 = tpu.matmul %5, %16, %cst_19 {dimension_numbers = #tpu.dot_dimension_numbers<[1], [0], [0], [1], [0, 0, 1, 1], [], []>} : vector<8x16xf32>, vector<16x128xf32>, vector<8x128xf32> -> vector<8x128xf32>
    %c0_20 = arith.constant 0 : index
    %c0_21 = arith.constant 0 : index
    %18 = vector.load %arg12[%c0_20, %c0_21] : memref<1x128xf32, #tpu.memory_space<vmem>>, vector<1x128xf32>
    %19 = vector.broadcast %18 : vector<1x128xf32> to vector<8x128xf32>
    %20 = arith.addf %17, %19 : vector<8x128xf32>
    %c0_22 = arith.constant 0 : index
    %c0_23 = arith.constant 0 : index
    %c0_24 = arith.constant 0 : index
    %21 = vector.load %arg5[%c0_22, %c0_23, %c0_24] : memref<1x8x1xf32, #tpu.memory_space<vmem>>, vector<1x8x1xf32>
    %22 = vector.shape_cast %21 : vector<1x8x1xf32> to vector<8x1xf32>
    %c0_25 = arith.constant 0 : index
    %c0_26 = arith.constant 0 : index
    %c0_27 = arith.constant 0 : index
    %23 = vector.load %arg6[%c0_25, %c0_26, %c0_27] : memref<1x1x8xf32, #tpu.memory_space<vmem>>, vector<1x1x8xf32>
    %24 = vector.shape_cast %23 : vector<1x1x8xf32> to vector<1x8xf32>
    %25 = vector.broadcast %22 : vector<8x1xf32> to vector<8x8xf32>
    %26 = vector.broadcast %24 : vector<1x8xf32> to vector<8x8xf32>
    %27 = arith.mulf %25, %26 : vector<8x8xf32>
    %28 = vector.extract_strided_slice %10 {offsets = [0, 0], sizes = [8, 32], strides = [1, 1]} : vector<8x128xf32> to vector<8x32xf32>
    %29 = vector.extract_strided_slice %15 {offsets = [0, 0], sizes = [8, 32], strides = [1, 1]} : vector<8x128xf32> to vector<8x32xf32>
    %30 = vector.extract_strided_slice %20 {offsets = [0, 0], sizes = [8, 32], strides = [1, 1]} : vector<8x128xf32> to vector<8x32xf32>
    %cst_28 = arith.constant dense<0.000000e+00> : vector<8x8xf32>
    %31 = tpu.matmul %28, %29, %cst_28 {dimension_numbers = #tpu.dot_dimension_numbers<[1], [1], [0], [0], [0, 0, 1, 0], [], []>} : vector<8x32xf32>, vector<8x32xf32>, vector<8x8xf32> -> vector<8x8xf32>
    %cst_29 = arith.constant 0.176776692 : f32
    %32 = vector.broadcast %cst_29 : f32 to vector<8x8xf32>
    %33 = arith.mulf %31, %32 : vector<8x8xf32>
    %34 = arith.mulf %33, %27 : vector<8x8xf32>
    %cst_30 = arith.constant dense<0xFF800000> : vector<8xf32>
    %35 = vector.multi_reduction <maximumf>, %34, %cst_30 [1] : vector<8x8xf32> to vector<8xf32>
    %36 = vector.shape_cast %35 : vector<8xf32> to vector<8x1xf32>
    %37 = vector.broadcast %36 : vector<8x1xf32> to vector<8x8xf32>
    %38 = arith.subf %34, %37 : vector<8x8xf32>
    %39 = math.exp %38 : vector<8x8xf32>
    %40 = arith.mulf %39, %27 : vector<8x8xf32>
    %cst_31 = arith.constant dense<0.000000e+00> : vector<8xf32>
    %41 = vector.multi_reduction <add>, %40, %cst_31 [1] : vector<8x8xf32> to vector<8xf32>
    %42 = vector.shape_cast %41 : vector<8xf32> to vector<8x1xf32>
    %cst_32 = arith.constant dense<0.000000e+00> : vector<8xf32>
    %43 = vector.multi_reduction <add>, %39, %cst_32 [1] : vector<8x8xf32> to vector<8xf32>
    %44 = vector.shape_cast %43 : vector<8xf32> to vector<8x1xf32>
    %cst_33 = arith.constant 9.99999982E-14 : f32
    %45 = vector.broadcast %cst_33 : f32 to vector<8x1xf32>
    %46 = arith.mulf %45, %44 : vector<8x1xf32>
    %47 = arith.addf %42, %46 : vector<8x1xf32>
    %48 = tpu.reciprocal %47 : vector<8x1xf32> -> vector<8x1xf32>
    %49 = vector.broadcast %48 : vector<8x1xf32> to vector<8x8xf32>
    %50 = arith.mulf %40, %49 : vector<8x8xf32>
    %cst_34 = arith.constant dense<0.000000e+00> : vector<8x32xf32>
    %51 = tpu.matmul %50, %30, %cst_34 {dimension_numbers = #tpu.dot_dimension_numbers<[1], [0], [0], [1], [0, 0, 1, 1], [], []>} : vector<8x8xf32>, vector<8x32xf32>, vector<8x32xf32> -> vector<8x32xf32>
    %52 = vector.extract_strided_slice %10 {offsets = [0, 32], sizes = [8, 32], strides = [1, 1]} : vector<8x128xf32> to vector<8x32xf32>
    %53 = vector.extract_strided_slice %15 {offsets = [0, 32], sizes = [8, 32], strides = [1, 1]} : vector<8x128xf32> to vector<8x32xf32>
    %54 = vector.extract_strided_slice %20 {offsets = [0, 32], sizes = [8, 32], strides = [1, 1]} : vector<8x128xf32> to vector<8x32xf32>
    %cst_35 = arith.constant dense<0.000000e+00> : vector<8x8xf32>
    %55 = tpu.matmul %52, %53, %cst_35 {dimension_numbers = #tpu.dot_dimension_numbers<[1], [1], [0], [0], [0, 0, 1, 0], [], []>} : vector<8x32xf32>, vector<8x32xf32>, vector<8x8xf32> -> vector<8x8xf32>
    %cst_36 = arith.constant 0.176776692 : f32
    %56 = vector.broadcast %cst_36 : f32 to vector<8x8xf32>
    %57 = arith.mulf %55, %56 : vector<8x8xf32>
    %58 = arith.mulf %57, %27 : vector<8x8xf32>
    %cst_37 = arith.constant dense<0xFF800000> : vector<8xf32>
    %59 = vector.multi_reduction <maximumf>, %58, %cst_37 [1] : vector<8x8xf32> to vector<8xf32>
    %60 = vector.shape_cast %59 : vector<8xf32> to vector<8x1xf32>
    %61 = vector.broadcast %60 : vector<8x1xf32> to vector<8x8xf32>
    %62 = arith.subf %58, %61 : vector<8x8xf32>
    %63 = math.exp %62 : vector<8x8xf32>
    %64 = arith.mulf %63, %27 : vector<8x8xf32>
    %cst_38 = arith.constant dense<0.000000e+00> : vector<8xf32>
    %65 = vector.multi_reduction <add>, %64, %cst_38 [1] : vector<8x8xf32> to vector<8xf32>
    %66 = vector.shape_cast %65 : vector<8xf32> to vector<8x1xf32>
    %cst_39 = arith.constant dense<0.000000e+00> : vector<8xf32>
    %67 = vector.multi_reduction <add>, %63, %cst_39 [1] : vector<8x8xf32> to vector<8xf32>
    %68 = vector.shape_cast %67 : vector<8xf32> to vector<8x1xf32>
    %cst_40 = arith.constant 9.99999982E-14 : f32
    %69 = vector.broadcast %cst_40 : f32 to vector<8x1xf32>
    %70 = arith.mulf %69, %68 : vector<8x1xf32>
    %71 = arith.addf %66, %70 : vector<8x1xf32>
    %72 = tpu.reciprocal %71 : vector<8x1xf32> -> vector<8x1xf32>
    %73 = vector.broadcast %72 : vector<8x1xf32> to vector<8x8xf32>
    %74 = arith.mulf %64, %73 : vector<8x8xf32>
    %cst_41 = arith.constant dense<0.000000e+00> : vector<8x32xf32>
    %75 = tpu.matmul %74, %54, %cst_41 {dimension_numbers = #tpu.dot_dimension_numbers<[1], [0], [0], [1], [0, 0, 1, 1], [], []>} : vector<8x8xf32>, vector<8x32xf32>, vector<8x32xf32> -> vector<8x32xf32>
    %76 = vector.extract_strided_slice %10 {offsets = [0, 64], sizes = [8, 32], strides = [1, 1]} : vector<8x128xf32> to vector<8x32xf32>
    %77 = vector.extract_strided_slice %15 {offsets = [0, 64], sizes = [8, 32], strides = [1, 1]} : vector<8x128xf32> to vector<8x32xf32>
    %78 = vector.extract_strided_slice %20 {offsets = [0, 64], sizes = [8, 32], strides = [1, 1]} : vector<8x128xf32> to vector<8x32xf32>
    %cst_42 = arith.constant dense<0.000000e+00> : vector<8x8xf32>
    %79 = tpu.matmul %76, %77, %cst_42 {dimension_numbers = #tpu.dot_dimension_numbers<[1], [1], [0], [0], [0, 0, 1, 0], [], []>} : vector<8x32xf32>, vector<8x32xf32>, vector<8x8xf32> -> vector<8x8xf32>
    %cst_43 = arith.constant 0.176776692 : f32
    %80 = vector.broadcast %cst_43 : f32 to vector<8x8xf32>
    %81 = arith.mulf %79, %80 : vector<8x8xf32>
    %82 = arith.mulf %81, %27 : vector<8x8xf32>
    %cst_44 = arith.constant dense<0xFF800000> : vector<8xf32>
    %83 = vector.multi_reduction <maximumf>, %82, %cst_44 [1] : vector<8x8xf32> to vector<8xf32>
    %84 = vector.shape_cast %83 : vector<8xf32> to vector<8x1xf32>
    %85 = vector.broadcast %84 : vector<8x1xf32> to vector<8x8xf32>
    %86 = arith.subf %82, %85 : vector<8x8xf32>
    %87 = math.exp %86 : vector<8x8xf32>
    %88 = arith.mulf %87, %27 : vector<8x8xf32>
    %cst_45 = arith.constant dense<0.000000e+00> : vector<8xf32>
    %89 = vector.multi_reduction <add>, %88, %cst_45 [1] : vector<8x8xf32> to vector<8xf32>
    %90 = vector.shape_cast %89 : vector<8xf32> to vector<8x1xf32>
    %cst_46 = arith.constant dense<0.000000e+00> : vector<8xf32>
    %91 = vector.multi_reduction <add>, %87, %cst_46 [1] : vector<8x8xf32> to vector<8xf32>
    %92 = vector.shape_cast %91 : vector<8xf32> to vector<8x1xf32>
    %cst_47 = arith.constant 9.99999982E-14 : f32
    %93 = vector.broadcast %cst_47 : f32 to vector<8x1xf32>
    %94 = arith.mulf %93, %92 : vector<8x1xf32>
    %95 = arith.addf %90, %94 : vector<8x1xf32>
    %96 = tpu.reciprocal %95 : vector<8x1xf32> -> vector<8x1xf32>
    %97 = vector.broadcast %96 : vector<8x1xf32> to vector<8x8xf32>
    %98 = arith.mulf %88, %97 : vector<8x8xf32>
    %cst_48 = arith.constant dense<0.000000e+00> : vector<8x32xf32>
    %99 = tpu.matmul %98, %78, %cst_48 {dimension_numbers = #tpu.dot_dimension_numbers<[1], [0], [0], [1], [0, 0, 1, 1], [], []>} : vector<8x8xf32>, vector<8x32xf32>, vector<8x32xf32> -> vector<8x32xf32>
    %100 = tpu.concatenate %51, %75, %99 in 1 : vector<8x32xf32>, vector<8x32xf32>, vector<8x32xf32> -> vector<8x96xf32>
    %c0_49 = arith.constant 0 : index
    %c0_50 = arith.constant 0 : index
    %101 = vector.load %arg13[%c0_49, %c0_50] : memref<96x128xf32, #tpu.memory_space<vmem>>, vector<96x128xf32>
    %cst_51 = arith.constant dense<0.000000e+00> : vector<8x128xf32>
    %102 = tpu.matmul %100, %101, %cst_51 {dimension_numbers = #tpu.dot_dimension_numbers<[1], [0], [0], [1], [0, 0, 1, 1], [], []>} : vector<8x96xf32>, vector<96x128xf32>, vector<8x128xf32> -> vector<8x128xf32>
    %c0_52 = arith.constant 0 : index
    %c0_53 = arith.constant 0 : index
    %103 = vector.load %arg14[%c0_52, %c0_53] : memref<1x128xf32, #tpu.memory_space<vmem>>, vector<1x128xf32>
    %104 = vector.broadcast %103 : vector<1x128xf32> to vector<8x128xf32>
    %105 = arith.addf %102, %104 : vector<8x128xf32>
    %c0_54 = arith.constant 0 : index
    %c0_55 = arith.constant 0 : index
    %c0_56 = arith.constant 0 : index
    %106 = vector.load %arg15[%c0_54, %c0_55, %c0_56] : memref<1x8x128xf32, #tpu.memory_space<vmem>>, vector<1x8x128xf32>
    %107 = vector.shape_cast %106 : vector<1x8x128xf32> to vector<8x128xf32>
    %108 = vector.shape_cast %105 : vector<8x128xf32> to vector<1x8x128xf32>
    tpu.vector_store %arg15[%c0_54, %c0_55, %c0_56], %108 {strides = array<i32>} : memref<1x8x128xf32, #tpu.memory_space<vmem>>, vector<1x8x128xf32>,
    return
  }
  func.func @transform_0(%arg0: i32, %arg1: i32) -> (i32, i32, i32) {
    %c0_i32 = arith.constant 0 : i32
    %c0_i32_0 = arith.constant 0 : i32
    return %arg0, %arg1, %c0_i32 : i32, i32, i32
  }
  func.func @transform_1(%arg0: i32, %arg1: i32) -> (i32, i32, i32) {
    %c0_i32 = arith.constant 0 : i32
    %c0_i32_0 = arith.constant 0 : i32
    %c0_i32_1 = arith.constant 0 : i32
    return %arg0, %c0_i32, %c0_i32_0 : i32, i32, i32
  }
  func.func @transform_2(%arg0: i32, %arg1: i32) -> (i32, i32, i32) {
    %c0_i32 = arith.constant 0 : i32
    %c0_i32_0 = arith.constant 0 : i32
    %c0_i32_1 = arith.constant 0 : i32
    return %arg0, %c0_i32, %c0_i32_0 : i32, i32, i32
  }
  func.func @transform_3(%arg0: i32, %arg1: i32) -> (i32, i32, i32) {
    %c0_i32 = arith.constant 0 : i32
    %c0_i32_0 = arith.constant 0 : i32
    return %arg0, %arg1, %c0_i32 : i32, i32, i32
  }
  func.func @transform_4(%arg0: i32, %arg1: i32) -> (i32, i32, i32) {
    %c0_i32 = arith.constant 0 : i32
    %c0_i32_0 = arith.constant 0 : i32
    %c0_i32_1 = arith.constant 0 : i32
    return %arg0, %c0_i32, %c0_i32_0 : i32, i32, i32
  }
  func.func @transform_5(%arg0: i32, %arg1: i32) -> (i32, i32) {
    %c0_i32 = arith.constant 0 : i32
    %c0_i32_0 = arith.constant 0 : i32
    %c0_i32_1 = arith.constant 0 : i32
    return %c0_i32, %c0_i32_0 : i32, i32
  }
  func.func @transform_6(%arg0: i32, %arg1: i32) -> (i32, i32) {
    %c0_i32 = arith.constant 0 : i32
    %c0_i32_0 = arith.constant 0 : i32
    %c0_i32_1 = arith.constant 0 : i32
    return %c0_i32, %c0_i32_0 : i32, i32
  }
  func.func @transform_7(%arg0: i32, %arg1: i32) -> (i32, i32) {
    %c0_i32 = arith.constant 0 : i32
    %c0_i32_0 = arith.constant 0 : i32
    %c0_i32_1 = arith.constant 0 : i32
    return %c0_i32, %c0_i32_0 : i32, i32
  }
  func.func @transform_8(%arg0: i32, %arg1: i32) -> (i32, i32) {
    %c0_i32 = arith.constant 0 : i32
    %c0_i32_0 = arith.constant 0 : i32
    %c0_i32_1 = arith.constant 0 : i32
    return %c0_i32, %c0_i32_0 : i32, i32
  }
  func.func @transform_9(%arg0: i32, %arg1: i32) -> (i32, i32) {
    %c0_i32 = arith.constant 0 : i32
    %c0_i32_0 = arith.constant 0 : i32
    %c0_i32_1 = arith.constant 0 : i32
    return %c0_i32, %c0_i32_0 : i32, i32
  }
  func.func @transform_10(%arg0: i32, %arg1: i32) -> (i32, i32) {
    %c0_i32 = arith.constant 0 : i32
    %c0_i32_0 = arith.constant 0 : i32
    %c0_i32_1 = arith.constant 0 : i32
    return %c0_i32, %c0_i32_0 : i32, i32
  }
  func.func @transform_11(%arg0: i32, %arg1: i32) -> (i32, i32) {
    %c0_i32 = arith.constant 0 : i32
    %c0_i32_0 = arith.constant 0 : i32
    %c0_i32_1 = arith.constant 0 : i32
    return %c0_i32, %c0_i32_0 : i32, i32
  }
  func.func @transform_12(%arg0: i32, %arg1: i32) -> (i32, i32) {
    %c0_i32 = arith.constant 0 : i32
    %c0_i32_0 = arith.constant 0 : i32
    %c0_i32_1 = arith.constant 0 : i32
    return %c0_i32, %c0_i32_0 : i32, i32
  }
  func.func @transform_13(%arg0: i32, %arg1: i32) -> (i32, i32, i32) {
    %c0_i32 = arith.constant 0 : i32
    %c0_i32_0 = arith.constant 0 : i32
    return %arg0, %arg1, %c0_i32 : i32, i32, i32
  }
}

</mosaic_0001>

<llo_original>
// kernel: tpu_custom_call.1
$region0: #{tpu_custom_call.1}
  #allocation0 [shape = 'u32[]', space=smem, size = 0x4, offset = 0x4, fixed_abs, tag = 'smem constant byte address 0x4 - core index']
  #allocation1 [shape = 'u32[72,128]{1,0:T(1,128)}', space=vmem, size = 0x9000, scoped, tag = 'internal scratch']
  %s0 = inlined_call_operand.vmem [shape: f32[2,8,16], index: 0, kind: input, shape index: {}]
  %s1 = inlined_call_operand.hbm [shape: f32[2,8,16], index: 1, kind: input, shape index: {}]
  %s2 = inlined_call_operand.hbm [shape: f32[2,8,16], index: 2, kind: input, shape index: {}]
  %s3 = inlined_call_operand.vmem [shape: f32[2,8,1], index: 3, kind: input, shape index: {}]
  %s4 = inlined_call_operand.vmem [shape: f32[2,1,8], index: 4, kind: input, shape index: {}]
  %s5 = inlined_call_operand.hbm [shape: f32[16,128], index: 5, kind: input, shape index: {}]
  %s6 = inlined_call_operand.vmem [shape: f32[1,128], index: 6, kind: input, shape index: {}]
  %s7 = inlined_call_operand.hbm [shape: f32[16,128], index: 7, kind: input, shape index: {}]
  %s8 = inlined_call_operand.vmem [shape: f32[1,128], index: 8, kind: input, shape index: {}]
  %s9 = inlined_call_operand.hbm [shape: f32[16,128], index: 9, kind: input, shape index: {}]
  %s10 = inlined_call_operand.vmem [shape: f32[1,128], index: 10, kind: input, shape index: {}]
  %s11 = inlined_call_operand.hbm [shape: f32[96,128], index: 11, kind: input, shape index: {}]
  %s12 = inlined_call_operand.vmem [shape: f32[1,128], index: 12, kind: input, shape index: {}]
  %s13 = inlined_call_operand.hbm [shape: f32[2,8,128], index: 13, kind: output, shape index: {}]
  %s14 = sld [smem:[#allocation0]]
  $region109: #{tpu_custom_call.1} parent=0
    _
  %s16 = ssub.s32 1, %s14
  %s17 = scalar_select 0, %s16, %s14
  $region1: #{tpu_custom_call.1} parent=0
    #allocation2 [shape = 'u8[8192]{0}', space=vmem, size = 0x2000, scoped, tag = 'input window, operand 1']
    #allocation3 [shape = 's32[2]{0}', space=sflag, size = 0x8, scoped, tag = 'scoped memory for tpu_custom_call.1']
    #allocation4 [shape = 's32[2]{0}', space=sflag, size = 0x8, scoped, tag = 'scoped memory for tpu_custom_call.1']
    #allocation5 [shape = 'u8[8192]{0}', space=vmem, size = 0x2000, scoped, tag = 'input window, operand 2']
    #allocation6 [shape = 's32[2]{0}', space=sflag, size = 0x8, scoped, tag = 'scoped memory for tpu_custom_call.1']
    #allocation7 [shape = 'u8[8192]{0}', space=vmem, size = 0x2000, scoped, tag = 'input window, operand 5, single buffered']
    #allocation8 [shape = 'u8[8192]{0}', space=vmem, size = 0x2000, scoped, tag = 'input window, operand 7, single buffered']
    #allocation9 [shape = 's32[1]{0}', space=sflag, size = 0x4, scoped, tag = 'scoped memory for tpu_custom_call.1']
    #allocation10 [shape = 'u8[8192]{0}', space=vmem, size = 0x2000, scoped, tag = 'input window, operand 9, single buffered']
    #allocation11 [shape = 'u8[49152]{0}', space=vmem, size = 0xc000, scoped, tag = 'input window, operand 11, single buffered']
    #allocation12 [shape = 's32[1]{0}', space=sflag, size = 0x4, scoped, tag = 'scoped memory for tpu_custom_call.1']
    #allocation13 [shape = 'u8[8192]{0}', space=vmem, size = 0x2000, scoped, tag = 'output window, operand 0']
    %18 = vsyncpa [#allocation3], 0
    %s19 = scalar_lea.sflag [#allocation3], 1
    %20 = vsyncpa %s19, 0
    %21 = vsyncpa [#allocation6], 0
    %s22 = scalar_lea.sflag [#allocation6], 1
    %23 = vsyncpa %s22, 0
    %24 = vsyncpa [#allocation9], 0
    %25 = vsyncpa [#allocation12], 0
    %26 = vsyncpa [#allocation4], 0
    %s27 = scalar_lea.sflag [#allocation4], 1
    %28 = vsyncpa %s27, 0
    loop: start=0, step=1, limit=4
    $region2: #{tpu_custom_call.1} parent=1 // loop_pre_header
      _
    $region3: #{tpu_custom_call.1} parent=1 // loop_header
      %s30 = sphi 0, %s34
      %p31 = scmp.ge.s32.totalorder %s30, 4
      %s37 = sphi 0, %s49
      %s38 = sphi 0, %s45
      %s39 = sphi 0, %s37
      %s40 = sphi 0, %s38
      %s41 = sphi 0, %s39
      %s42 = sphi 0, %s40
      %s54 = sphi 0, %s56
      %s57 = sphi 0, %s54
      %s58 = sphi 0, %s57
      %s74 = sphi 0, %s58
      %s80 = sphi 0, %s82
      %s83 = sphi 0, %s80
      %s84 = sphi 0, %s83
      %s100 = sphi 0, %s84
      %s106 = sphi 0, %s108
      %s109 = sphi 0, %s106
      %s110 = sphi 0, %s109
      %s126 = sphi 0, %s110
      %s134 = sphi 0, %s136
      %s137 = sphi 0, %s134
      %s138 = sphi 0, %s137
      %s154 = sphi 0, %s138
      %s160 = sphi 0, %s162
      %s163 = sphi 0, %s160
      %s164 = sphi 0, %s163
      %s180 = sphi 0, %s164
      %s184 = sphi 0, %s184
      %s186 = sphi 0, %s184
      %s187 = sphi 0, %s186
      %s201 = sphi 0, %s187
      %s205 = sphi 0, %s205
      %s207 = sphi 0, %s205
      %s208 = sphi 0, %s207
      %s222 = sphi 0, %s208
      %s226 = sphi 0, %s226
      %s228 = sphi 0, %s226
      %s229 = sphi 0, %s228
      %s243 = sphi 0, %s229
      %s247 = sphi 0, %s247
      %s249 = sphi 0, %s247
      %s250 = sphi 0, %s249
      %s264 = sphi 0, %s250
      %s268 = sphi 0, %s268
      %s270 = sphi 0, %s268
      %s271 = sphi 0, %s270
      %s285 = sphi 0, %s271
      %s289 = sphi 0, %s289
      %s291 = sphi 0, %s289
      %s292 = sphi 0, %s291
      %s306 = sphi 0, %s292
      %s310 = sphi 0, %s310
      %s312 = sphi 0, %s310
      %s313 = sphi 0, %s312
      %s327 = sphi 0, %s313
      %s331 = sphi 0, %s331
      %s333 = sphi 0, %s331
      %s334 = sphi 0, %s333
      %s348 = sphi 0, %s334
      %s356 = sphi 0, %s358
      %s359 = sphi 0, %s356
      %s360 = sphi 0, %s359
      %s376 = sphi 0, %s360
    $region4: #{tpu_custom_call.1} parent=1 // loop_header_branch
      %33 = sbr.rel (%p31) target = $region8
    $region5: #{tpu_custom_call.1} parent=1 // loop_body
      %s35 = ssub.s32 %s30, 1
      %s36 = ssub.s32 %s30, 2
      %s43 = sadd.s32 1, %s38
      %p44 = scmp.ge.s32.totalorder %s43, 1
      %s45 = scalar_select %p44, 0, %s43
      %s46 = sadd.s32 1, %s37
      %s47 = scalar_select %p44, %s46, %s37
      %p48 = scmp.ge.s32.totalorder %s47, 2
      %s49 = scalar_select %p48, 0, %s47
      %s50 = ssub.s32 %s37, %s49
      %s51 = ssub.s32 %s38, %s45
      %s52 = sor.u32 %s50, %s51
      %p53 = scmp.eq.s32.totalorder %s52, 0
      %s55 = sadd.s32 %s54, 1
      %s56 = scalar_select %p53, %s54, %s55
      %p59 = pneg %p53
      %p60 = scmp.eq.s32.totalorder %s30, 1
      %p61 = por %p59, %p60
      %p62 = scmp.ne.s32.totalorder %s54, %s57
      %p63 = scmp.eq.s32.totalorder %s30, 0
      %p64 = por %p62, %p63
      %p65 = scmp.ne.s32.totalorder %s54, %s57
      %p66 = scmp.eq.s32.totalorder %s35, 1
      %p67 = por %p65, %p66
      %p68 = scmp.ne.s32.totalorder %s57, %s58
      %p69 = scmp.eq.s32.totalorder %s35, 0
      %p70 = por %p68, %p69
      %p71 = scmp.ne.s32.totalorder %s57, %s58
      %p72 = scmp.eq.s32.totalorder %s36, 1
      %p73 = por %p71, %p72
      %p75 = scmp.ne.s32.totalorder %s58, %s74
      %p76 = scmp.eq.s32.totalorder %s36, 0
      %p77 = por %p75, %p76
      %s78 = ssub.s32 %s37, %s49
      %p79 = scmp.eq.s32.totalorder %s78, 0
      %s81 = sadd.s32 %s80, 1
      %s82 = scalar_select %p79, %s80, %s81
      %p85 = pneg %p79
      %p86 = scmp.eq.s32.totalorder %s30, 1
      %p87 = por %p85, %p86
      %p88 = scmp.ne.s32.totalorder %s80, %s83
      %p89 = scmp.eq.s32.totalorder %s30, 0
      %p90 = por %p88, %p89
      %p91 = scmp.ne.s32.totalorder %s80, %s83
      %p92 = scmp.eq.s32.totalorder %s35, 1
      %p93 = por %p91, %p92
      %p94 = scmp.ne.s32.totalorder %s83, %s84
      %p95 = scmp.eq.s32.totalorder %s35, 0
      %p96 = por %p94, %p95
      %p97 = scmp.ne.s32.totalorder %s83, %s84
      %p98 = scmp.eq.s32.totalorder %s36, 1
      %p99 = por %p97, %p98
      %p101 = scmp.ne.s32.totalorder %s84, %s100
      %p102 = scmp.eq.s32.totalorder %s36, 0
      %p103 = por %p101, %p102
      %s104 = ssub.s32 %s37, %s49
      %p105 = scmp.eq.s32.totalorder %s104, 0
      %s107 = sadd.s32 %s106, 1
      %s108 = scalar_select %p105, %s106, %s107
      %p111 = pneg %p105
      %p112 = scmp.eq.s32.totalorder %s30, 1
      %p113 = por %p111, %p112
      %p114 = scmp.ne.s32.totalorder %s106, %s109
      %p115 = scmp.eq.s32.totalorder %s30, 0
      %p116 = por %p114, %p115
      %p117 = scmp.ne.s32.totalorder %s106, %s109
      %p118 = scmp.eq.s32.totalorder %s35, 1
      %p119 = por %p117, %p118
      %p120 = scmp.ne.s32.totalorder %s109, %s110
      %p121 = scmp.eq.s32.totalorder %s35, 0
      %p122 = por %p120, %p121
      %p123 = scmp.ne.s32.totalorder %s109, %s110
      %p124 = scmp.eq.s32.totalorder %s36, 1
      %p125 = por %p123, %p124
      %p127 = scmp.ne.s32.totalorder %s110, %s126
      %p128 = scmp.eq.s32.totalorder %s36, 0
      %p129 = por %p127, %p128
      %s130 = ssub.s32 %s37, %s49
      %s131 = ssub.s32 %s38, %s45
      %s132 = sor.u32 %s130, %s131
      %p133 = scmp.eq.s32.totalorder %s132, 0
      %s135 = sadd.s32 %s134, 1
      %s136 = scalar_select %p133, %s134, %s135
      %p139 = pneg %p133
      %p140 = scmp.eq.s32.totalorder %s30, 1
      %p141 = por %p139, %p140
      %p142 = scmp.ne.s32.totalorder %s134, %s137
      %p143 = scmp.eq.s32.totalorder %s30, 0
      %p144 = por %p142, %p143
      %p145 = scmp.ne.s32.totalorder %s134, %s137
      %p146 = scmp.eq.s32.totalorder %s35, 1
      %p147 = por %p145, %p146
      %p148 = scmp.ne.s32.totalorder %s137, %s138
      %p149 = scmp.eq.s32.totalorder %s35, 0
      %p150 = por %p148, %p149
      %p151 = scmp.ne.s32.totalorder %s137, %s138
      %p152 = scmp.eq.s32.totalorder %s36, 1
      %p153 = por %p151, %p152
      %p155 = scmp.ne.s32.totalorder %s138, %s154
      %p156 = scmp.eq.s32.totalorder %s36, 0
      %p157 = por %p155, %p156
      %s158 = ssub.s32 %s37, %s49
      %p159 = scmp.eq.s32.totalorder %s158, 0
      %s161 = sadd.s32 %s160, 1
      %s162 = scalar_select %p159, %s160, %s161
      %p165 = pneg %p159
      %p166 = scmp.eq.s32.totalorder %s30, 1
      %p167 = por %p165, %p166
      %p168 = scmp.ne.s32.totalorder %s160, %s163
      %p169 = scmp.eq.s32.totalorder %s30, 0
      %p170 = por %p168, %p169
      %p171 = scmp.ne.s32.totalorder %s160, %s163
      %p172 = scmp.eq.s32.totalorder %s35, 1
      %p173 = por %p171, %p172
      %p174 = scmp.ne.s32.totalorder %s163, %s164
      %p175 = scmp.eq.s32.totalorder %s35, 0
      %p176 = por %p174, %p175
      %p177 = scmp.ne.s32.totalorder %s163, %s164
      %p178 = scmp.eq.s32.totalorder %s36, 1
      %p179 = por %p177, %p178
      %p181 = scmp.ne.s32.totalorder %s164, %s180
      %p182 = scmp.eq.s32.totalorder %s36, 0
      %p183 = por %p181, %p182
      %s185 = sadd.s32 %s184, 1
      %p188 = scmp.eq.s32.totalorder %s30, 1
      %p189 = scmp.ne.s32.totalorder %s184, %s186
      %p190 = scmp.eq.s32.totalorder %s30, 0
      %p191 = por %p189, %p190
      %p192 = scmp.ne.s32.totalorder %s184, %s186
      %p193 = scmp.eq.s32.totalorder %s35, 1
      %p194 = por %p192, %p193
      %p195 = scmp.ne.s32.totalorder %s186, %s187
      %p196 = scmp.eq.s32.totalorder %s35, 0
      %p197 = por %p195, %p196
      %p198 = scmp.ne.s32.totalorder %s186, %s187
      %p199 = scmp.eq.s32.totalorder %s36, 1
      %p200 = por %p198, %p199
      %p202 = scmp.ne.s32.totalorder %s187, %s201
      %p203 = scmp.eq.s32.totalorder %s36, 0
      %p204 = por %p202, %p203
      %s206 = sadd.s32 %s205, 1
      %p209 = scmp.eq.s32.totalorder %s30, 1
      %p210 = scmp.ne.s32.totalorder %s205, %s207
      %p211 = scmp.eq.s32.totalorder %s30, 0
      %p212 = por %p210, %p211
      %p213 = scmp.ne.s32.totalorder %s205, %s207
      %p214 = scmp.eq.s32.totalorder %s35, 1
      %p215 = por %p213, %p214
      %p216 = scmp.ne.s32.totalorder %s207, %s208
      %p217 = scmp.eq.s32.totalorder %s35, 0
      %p218 = por %p216, %p217
      %p219 = scmp.ne.s32.totalorder %s207, %s208
      %p220 = scmp.eq.s32.totalorder %s36, 1
      %p221 = por %p219, %p220
      %p223 = scmp.ne.s32.totalorder %s208, %s222
      %p224 = scmp.eq.s32.totalorder %s36, 0
      %p225 = por %p223, %p224
      %s227 = sadd.s32 %s226, 1
      %p230 = scmp.eq.s32.totalorder %s30, 1
      %p231 = scmp.ne.s32.totalorder %s226, %s228
      %p232 = scmp.eq.s32.totalorder %s30, 0
      %p233 = por %p231, %p232
      %p234 = scmp.ne.s32.totalorder %s226, %s228
      %p235 = scmp.eq.s32.totalorder %s35, 1
      %p236 = por %p234, %p235
      %p237 = scmp.ne.s32.totalorder %s228, %s229
      %p238 = scmp.eq.s32.totalorder %s35, 0
      %p239 = por %p237, %p238
      %p240 = scmp.ne.s32.totalorder %s228, %s229
      %p241 = scmp.eq.s32.totalorder %s36, 1
      %p242 = por %p240, %p241
      %p244 = scmp.ne.s32.totalorder %s229, %s243
      %p245 = scmp.eq.s32.totalorder %s36, 0
      %p246 = por %p244, %p245
      %s248 = sadd.s32 %s247, 1
      %p251 = scmp.eq.s32.totalorder %s30, 1
      %p252 = scmp.ne.s32.totalorder %s247, %s249
      %p253 = scmp.eq.s32.totalorder %s30, 0
      %p254 = por %p252, %p253
      %p255 = scmp.ne.s32.totalorder %s247, %s249
      %p256 = scmp.eq.s32.totalorder %s35, 1
      %p257 = por %p255, %p256
      %p258 = scmp.ne.s32.totalorder %s249, %s250
      %p259 = scmp.eq.s32.totalorder %s35, 0
      %p260 = por %p258, %p259
      %p261 = scmp.ne.s32.totalorder %s249, %s250
      %p262 = scmp.eq.s32.totalorder %s36, 1
      %p263 = por %p261, %p262
      %p265 = scmp.ne.s32.totalorder %s250, %s264
      %p266 = scmp.eq.s32.totalorder %s36, 0
      %p267 = por %p265, %p266
      %s269 = sadd.s32 %s268, 1
      %p272 = scmp.eq.s32.totalorder %s30, 1
      %p273 = scmp.ne.s32.totalorder %s268, %s270
      %p274 = scmp.eq.s32.totalorder %s30, 0
      %p275 = por %p273, %p274
      %p276 = scmp.ne.s32.totalorder %s268, %s270
      %p277 = scmp.eq.s32.totalorder %s35, 1
      %p278 = por %p276, %p277
      %p279 = scmp.ne.s32.totalorder %s270, %s271
      %p280 = scmp.eq.s32.totalorder %s35, 0
      %p281 = por %p279, %p280
      %p282 = scmp.ne.s32.totalorder %s270, %s271
      %p283 = scmp.eq.s32.totalorder %s36, 1
      %p284 = por %p282, %p283
      %p286 = scmp.ne.s32.totalorder %s271, %s285
      %p287 = scmp.eq.s32.totalorder %s36, 0
      %p288 = por %p286, %p287
      %s290 = sadd.s32 %s289, 1
      %p293 = scmp.eq.s32.totalorder %s30, 1
      %p294 = scmp.ne.s32.totalorder %s289, %s291
      %p295 = scmp.eq.s32.totalorder %s30, 0
      %p296 = por %p294, %p295
      %p297 = scmp.ne.s32.totalorder %s289, %s291
      %p298 = scmp.eq.s32.totalorder %s35, 1
      %p299 = por %p297, %p298
      %p300 = scmp.ne.s32.totalorder %s291, %s292
      %p301 = scmp.eq.s32.totalorder %s35, 0
      %p302 = por %p300, %p301
      %p303 = scmp.ne.s32.totalorder %s291, %s292
      %p304 = scmp.eq.s32.totalorder %s36, 1
      %p305 = por %p303, %p304
      %p307 = scmp.ne.s32.totalorder %s292, %s306
      %p308 = scmp.eq.s32.totalorder %s36, 0
      %p309 = por %p307, %p308
      %s311 = sadd.s32 %s310, 1
      %p314 = scmp.eq.s32.totalorder %s30, 1
      %p315 = scmp.ne.s32.totalorder %s310, %s312
      %p316 = scmp.eq.s32.totalorder %s30, 0
      %p317 = por %p315, %p316
      %p318 = scmp.ne.s32.totalorder %s310, %s312
      %p319 = scmp.eq.s32.totalorder %s35, 1
      %p320 = por %p318, %p319
      %p321 = scmp.ne.s32.totalorder %s312, %s313
      %p322 = scmp.eq.s32.totalorder %s35, 0
      %p323 = por %p321, %p322
      %p324 = scmp.ne.s32.totalorder %s312, %s313
      %p325 = scmp.eq.s32.totalorder %s36, 1
      %p326 = por %p324, %p325
      %p328 = scmp.ne.s32.totalorder %s313, %s327
      %p329 = scmp.eq.s32.totalorder %s36, 0
      %p330 = por %p328, %p329
      %s332 = sadd.s32 %s331, 1
      %p335 = scmp.eq.s32.totalorder %s30, 1
      %p336 = scmp.ne.s32.totalorder %s331, %s333
      %p337 = scmp.eq.s32.totalorder %s30, 0
      %p338 = por %p336, %p337
      %p339 = scmp.ne.s32.totalorder %s331, %s333
      %p340 = scmp.eq.s32.totalorder %s35, 1
      %p341 = por %p339, %p340
      %p342 = scmp.ne.s32.totalorder %s333, %s334
      %p343 = scmp.eq.s32.totalorder %s35, 0
      %p344 = por %p342, %p343
      %p345 = scmp.ne.s32.totalorder %s333, %s334
      %p346 = scmp.eq.s32.totalorder %s36, 1
      %p347 = por %p345, %p346
      %p349 = scmp.ne.s32.totalorder %s334, %s348
      %p350 = scmp.eq.s32.totalorder %s36, 0
      %p351 = por %p349, %p350
      %s352 = ssub.s32 %s37, %s49
      %s353 = ssub.s32 %s38, %s45
      %s354 = sor.u32 %s352, %s353
      %p355 = scmp.eq.s32.totalorder %s354, 0
      %s357 = sadd.s32 %s356, 1
      %s358 = scalar_select %p355, %s356, %s357
      %p361 = pneg %p355
      %p362 = scmp.eq.s32.totalorder %s30, 1
      %p363 = por %p361, %p362
      %p364 = scmp.ne.s32.totalorder %s356, %s359
      %p365 = scmp.eq.s32.totalorder %s30, 0
      %p366 = por %p364, %p365
      %p367 = scmp.ne.s32.totalorder %s356, %s359
      %p368 = scmp.eq.s32.totalorder %s35, 1
      %p369 = por %p367, %p368
      %p370 = scmp.ne.s32.totalorder %s359, %s360
      %p371 = scmp.eq.s32.totalorder %s35, 0
      %p372 = por %p370, %p371
      %p373 = scmp.ne.s32.totalorder %s359, %s360
      %p374 = scmp.eq.s32.totalorder %s36, 1
      %p375 = por %p373, %p374
      %p377 = scmp.ne.s32.totalorder %s360, %s376
      %p378 = scmp.eq.s32.totalorder %s36, 0
      %p379 = por %p377, %p378
      %p380 = scmp.le.s32.totalorder 1, %s30
      %p381 = scmp.lt.s32.totalorder %s30, 3
      %p382 = pnand %p380, %p381
      %p383 = pneg %p382
      // Predicated region
      $region9: #{tpu_custom_call.1} parent=5 // pred_check
        _
      $region10: #{tpu_custom_call.1} parent=5 // pred_check_branch
        %385 = sbr.rel (%p382) target = $region12
      $region11: #{tpu_custom_call.1} parent=5 // pred_region
        %s386 = ssub.s32 %s30, 1
        // Predicated region
        $region13: #{tpu_custom_call.1} parent=11 // pred_check
          %p387 = pneg %p197
        $region14: #{tpu_custom_call.1} parent=11 // pred_check_branch
          %389 = sbr.rel (%p387) target = $region16
        $region15: #{tpu_custom_call.1} parent=11 // pred_region
          %391 = vsyncadd [#allocation6], 0
          %s392 = sshll.u32 %s5, 4
          %s393 = int_to_ptr.hbm [resolvable:$true] %s392
          %s394 = sshll.u32 [#allocation7], 4
          %s395 = int_to_ptr.vmem [resolvable:$true] %s394
          %400 = dma.hbm_to_vmem [thread:$0]  %s393, 256, %s395, [#allocation6], 128, 128, 8
        $region16: #{tpu_custom_call.1} parent=11 // pred_fallthru
          _
        // Predicated region
        $region17: #{tpu_custom_call.1} parent=11 // pred_check
          %p401 = pneg %p218
        $region18: #{tpu_custom_call.1} parent=11 // pred_check_branch
          %403 = sbr.rel (%p401) target = $region20
        $region19: #{tpu_custom_call.1} parent=11 // pred_region
          _
        $region20: #{tpu_custom_call.1} parent=11 // pred_fallthru
          _
        // Predicated region
        $region21: #{tpu_custom_call.1} parent=11 // pred_check
          %p404 = pneg %p239
        $region22: #{tpu_custom_call.1} parent=11 // pred_check_branch
          %406 = sbr.rel (%p404) target = $region24
        $region23: #{tpu_custom_call.1} parent=11 // pred_region
          %408 = vsyncadd [#allocation9], 0
          %s409 = sshll.u32 %s7, 4
          %s410 = int_to_ptr.hbm [resolvable:$true] %s409
          %s411 = sshll.u32 [#allocation8], 4
          %s412 = int_to_ptr.vmem [resolvable:$true] %s411
          %417 = dma.hbm_to_vmem [thread:$0]  %s410, 256, %s412, [#allocation9], 128, 128, 8
        $region24: #{tpu_custom_call.1} parent=11 // pred_fallthru
          _
        // Predicated region
        $region25: #{tpu_custom_call.1} parent=11 // pred_check
          %p418 = pneg %p260
        $region26: #{tpu_custom_call.1} parent=11 // pred_check_branch
          %420 = sbr.rel (%p418) target = $region28
        $region27: #{tpu_custom_call.1} parent=11 // pred_region
          _
        $region28: #{tpu_custom_call.1} parent=11 // pred_fallthru
          _
        // Predicated region
        $region29: #{tpu_custom_call.1} parent=11 // pred_check
          %p421 = pneg %p281
        $region30: #{tpu_custom_call.1} parent=11 // pred_check_branch
          %423 = sbr.rel (%p421) target = $region32
        $region31: #{tpu_custom_call.1} parent=11 // pred_region
          %425 = vsyncadd [#allocation9], 0
          %s426 = sshll.u32 %s9, 4
          %s427 = int_to_ptr.hbm [resolvable:$true] %s426
          %s428 = sshll.u32 [#allocation10], 4
          %s429 = int_to_ptr.vmem [resolvable:$true] %s428
          %434 = dma.hbm_to_vmem [thread:$0]  %s427, 256, %s429, [#allocation9], 128, 128, 8
        $region32: #{tpu_custom_call.1} parent=11 // pred_fallthru
          _
        // Predicated region
        $region33: #{tpu_custom_call.1} parent=11 // pred_check
          %p435 = pneg %p302
        $region34: #{tpu_custom_call.1} parent=11 // pred_check_branch
          %437 = sbr.rel (%p435) target = $region36
        $region35: #{tpu_custom_call.1} parent=11 // pred_region
          _
        $region36: #{tpu_custom_call.1} parent=11 // pred_fallthru
          _
        // Predicated region
        $region37: #{tpu_custom_call.1} parent=11 // pred_check
          %p438 = pneg %p323
        $region38: #{tpu_custom_call.1} parent=11 // pred_check_branch
          %440 = sbr.rel (%p438) target = $region40
        $region39: #{tpu_custom_call.1} parent=11 // pred_region
          %442 = vsyncadd [#allocation12], 0
          %s443 = sshll.u32 %s11, 4
          %s444 = int_to_ptr.hbm [resolvable:$true] %s443
          %s445 = sshll.u32 [#allocation11], 4
          %s446 = int_to_ptr.vmem [resolvable:$true] %s445
          %451 = dma.hbm_to_vmem [thread:$0]  %s444, 1536, %s446, [#allocation12], 128, 128, 8
        $region40: #{tpu_custom_call.1} parent=11 // pred_fallthru
          _
        // Predicated region
        $region41: #{tpu_custom_call.1} parent=11 // pred_check
          %p452 = pneg %p344
        $region42: #{tpu_custom_call.1} parent=11 // pred_check_branch
          %454 = sbr.rel (%p452) target = $region44
        $region43: #{tpu_custom_call.1} parent=11 // pred_region
          _
        $region44: #{tpu_custom_call.1} parent=11 // pred_fallthru
          _
      $region12: #{tpu_custom_call.1} parent=5 // pred_fallthru
        _
      %p455 = scmp.lt.s32.totalorder %s30, 2
      // Predicated region
      $region45: #{tpu_custom_call.1} parent=5 // pred_check
        %p456 = pneg %p455
      $region46: #{tpu_custom_call.1} parent=5 // pred_check_branch
        %458 = sbr.rel (%p456) target = $region48
      $region47: #{tpu_custom_call.1} parent=5 // pred_region
        // Predicated region
        $region49: #{tpu_custom_call.1} parent=47 // pred_check
          %p459 = pneg %p64
        $region50: #{tpu_custom_call.1} parent=47 // pred_check_branch
          %461 = sbr.rel (%p459) target = $region52
        $region51: #{tpu_custom_call.1} parent=47 // pred_region
          %p462 = scmp.lt.s32.totalorder %s37, 1
          %s463 = scalar_select %p462, %s37, 1
          %p464 = scmp.lt.s32.totalorder %s38, 0
          %s465 = scalar_select %p464, %s38, 0
          %s466 = sadd.s32 %s465, %s463
          %s467 = smul.addr %s466, 8
          %s468 = scalar_lea.vmem %s0, %s467
        $region52: #{tpu_custom_call.1} parent=47 // pred_fallthru
          _
        // Predicated region
        $region53: #{tpu_custom_call.1} parent=47 // pred_check
          %p469 = pneg %p90
        $region54: #{tpu_custom_call.1} parent=47 // pred_check_branch
          %471 = sbr.rel (%p469) target = $region56
        $region55: #{tpu_custom_call.1} parent=47 // pred_region
          %s472 = sand.u32 %s80, 1
          %s473 = scalar_lea.sflag [#allocation3], %s472
          %s474 = sand.u32 %s80, 1
          %s475 = smul.addr %s474, 8
          %s476 = scalar_lea.vmem [#allocation2], %s475
          %478 = vsyncadd %s473, 0
          %s479 = smul.addr %s37, 8
          %s480 = scalar_lea.hbm %s1, %s479
          %s482 = sshll.u32 %s480, 4
          %s483 = int_to_ptr.hbm [resolvable:$true] %s482
          %s484 = sshll.u32 %s476, 4
          %s485 = int_to_ptr.vmem [resolvable:$true] %s484
          %487 = dma.hbm_to_vmem [thread:$0]  %s483, 128, %s485, %s473
        $region56: #{tpu_custom_call.1} parent=47 // pred_fallthru
          _
        // Predicated region
        $region57: #{tpu_custom_call.1} parent=47 // pred_check
          %p488 = pneg %p116
        $region58: #{tpu_custom_call.1} parent=47 // pred_check_branch
          %490 = sbr.rel (%p488) target = $region60
        $region59: #{tpu_custom_call.1} parent=47 // pred_region
          %s491 = sand.u32 %s30, 1
          %s492 = scalar_lea.sflag [#allocation6], %s491
          %s493 = sand.u32 %s106, 1
          %s494 = smul.addr %s493, 8
          %s495 = scalar_lea.vmem [#allocation5], %s494
          %497 = vsyncadd %s492, 0
          %s498 = smul.addr %s37, 8
          %s499 = scalar_lea.hbm %s2, %s498
          %s501 = sshll.u32 %s499, 4
          %s502 = int_to_ptr.hbm [resolvable:$true] %s501
          %s503 = sshll.u32 %s495, 4
          %s504 = int_to_ptr.vmem [resolvable:$true] %s503
          %506 = dma.hbm_to_vmem [thread:$0]  %s502, 128, %s504, %s492
        $region60: #{tpu_custom_call.1} parent=47 // pred_fallthru
          _
        // Predicated region
        $region61: #{tpu_custom_call.1} parent=47 // pred_check
          %p507 = pneg %p144
        $region62: #{tpu_custom_call.1} parent=47 // pred_check_branch
          %509 = sbr.rel (%p507) target = $region64
        $region63: #{tpu_custom_call.1} parent=47 // pred_region
          %p510 = scmp.lt.s32.totalorder %s37, 1
          %s511 = scalar_select %p510, %s37, 1
          %p512 = scmp.lt.s32.totalorder %s38, 0
          %s513 = scalar_select %p512, %s38, 0
          %s514 = sadd.s32 %s513, %s511
          %s515 = smul.addr %s514, 8
          %s516 = scalar_lea.vmem %s3, %s515
        $region64: #{tpu_custom_call.1} parent=47 // pred_fallthru
          _
        // Predicated region
        $region65: #{tpu_custom_call.1} parent=47 // pred_check
          %p517 = pneg %p170
        $region66: #{tpu_custom_call.1} parent=47 // pred_check_branch
          %519 = sbr.rel (%p517) target = $region68
        $region67: #{tpu_custom_call.1} parent=47 // pred_region
          %p520 = scmp.lt.s32.totalorder %s37, 1
          %s521 = scalar_select %p520, %s37, 1
          %s522 = scalar_lea.vmem %s4, %s521
        $region68: #{tpu_custom_call.1} parent=47 // pred_fallthru
          _
      $region48: #{tpu_custom_call.1} parent=5 // pred_fallthru
        _
      %p523 = scmp.le.s32.totalorder 1, %s30
      %p524 = scmp.lt.s32.totalorder %s30, 3
      %p525 = pnand %p523, %p524
      %p526 = pneg %p525
      // Predicated region
      $region69: #{tpu_custom_call.1} parent=5 // pred_check
        _
      $region70: #{tpu_custom_call.1} parent=5 // pred_check_branch
        %528 = sbr.rel (%p525) target = $region72
      $region71: #{tpu_custom_call.1} parent=5 // pred_region
        %s529 = ssub.s32 %s30, 1
        %s530 = sand.u32 %s83, 1
        %s531 = scalar_lea.sflag [#allocation3], %s530
        %s532 = sand.u32 %s83, 1
        %s533 = smul.addr %s532, 8
        %s534 = scalar_lea.vmem [#allocation2], %s533
        // Predicated region
        $region73: #{tpu_custom_call.1} parent=71 // pred_check
          %p535 = pneg %p96
        $region74: #{tpu_custom_call.1} parent=71 // pred_check_branch
          %537 = sbr.rel (%p535) target = $region76
        $region75: #{tpu_custom_call.1} parent=71 // pred_region
          %539 = dma.done %s531, 128
        $region76: #{tpu_custom_call.1} parent=71 // pred_fallthru
          _
        %s540 = sand.u32 %s35, 1
        %s541 = scalar_lea.sflag [#allocation6], %s540
        %s542 = sand.u32 %s109, 1
        %s543 = smul.addr %s542, 8
        %s544 = scalar_lea.vmem [#allocation5], %s543
        // Predicated region
        $region77: #{tpu_custom_call.1} parent=71 // pred_check
          %p545 = pneg %p122
        $region78: #{tpu_custom_call.1} parent=71 // pred_check_branch
          %547 = sbr.rel (%p545) target = $region80
        $region79: #{tpu_custom_call.1} parent=71 // pred_region
          %549 = dma.done %s541, 128
        $region80: #{tpu_custom_call.1} parent=71 // pred_fallthru
          _
        // Predicated region
        $region81: #{tpu_custom_call.1} parent=71 // pred_check
          %p550 = pneg %p197
        $region82: #{tpu_custom_call.1} parent=71 // pred_check_branch
          %552 = sbr.rel (%p550) target = $region84
        $region83: #{tpu_custom_call.1} parent=71 // pred_region
          %554 = dma.done [#allocation6], 256
        $region84: #{tpu_custom_call.1} parent=71 // pred_fallthru
          _
        // Predicated region
        $region85: #{tpu_custom_call.1} parent=71 // pred_check
          %p555 = pneg %p239
        $region86: #{tpu_custom_call.1} parent=71 // pred_check_branch
          %557 = sbr.rel (%p555) target = $region88
        $region87: #{tpu_custom_call.1} parent=71 // pred_region
          %559 = dma.done [#allocation9], 256
        $region88: #{tpu_custom_call.1} parent=71 // pred_fallthru
          _
        // Predicated region
        $region89: #{tpu_custom_call.1} parent=71 // pred_check
          %p560 = pneg %p281
        $region90: #{tpu_custom_call.1} parent=71 // pred_check_branch
          %562 = sbr.rel (%p560) target = $region92
        $region91: #{tpu_custom_call.1} parent=71 // pred_region
          %564 = dma.done [#allocation9], 256
        $region92: #{tpu_custom_call.1} parent=71 // pred_fallthru
          _
        // Predicated region
        $region93: #{tpu_custom_call.1} parent=71 // pred_check
          %p565 = pneg %p323
        $region94: #{tpu_custom_call.1} parent=71 // pred_check_branch
          %567 = sbr.rel (%p565) target = $region96
        $region95: #{tpu_custom_call.1} parent=71 // pred_region
          %569 = dma.done [#allocation12], 1536
        $region96: #{tpu_custom_call.1} parent=71 // pred_fallthru
          _
        %p570 = scmp.lt.s32.totalorder %s39, 1
        %s571 = scalar_select %p570, %s39, 1
        %p572 = scmp.lt.s32.totalorder %s40, 0
        %s573 = scalar_select %p572, %s40, 0
        %s574 = sadd.s32 %s573, %s571
        %s575 = smul.addr %s574, 8
        %s576 = scalar_lea.vmem %s0, %s575
        %p577 = pneg %p70
        %p578 = pneg %p67
        %s579 = sand.u32 %s83, 1
        %s580 = scalar_lea.sflag [#allocation3], %s579
        %s581 = sand.u32 %s83, 1
        %s582 = smul.addr %s581, 8
        %s583 = scalar_lea.vmem [#allocation2], %s582
        %p584 = pneg %p96
        %p585 = pneg %p93
        %s586 = sand.u32 %s35, 1
        %s587 = scalar_lea.sflag [#allocation6], %s586
        %s588 = sand.u32 %s109, 1
        %s589 = smul.addr %s588, 8
        %s590 = scalar_lea.vmem [#allocation5], %s589
        %p591 = pneg %p122
        %p592 = pneg %p119
        %p593 = scmp.lt.s32.totalorder %s39, 1
        %s594 = scalar_select %p593, %s39, 1
        %p595 = scmp.lt.s32.totalorder %s40, 0
        %s596 = scalar_select %p595, %s40, 0
        %s597 = sadd.s32 %s596, %s594
        %s598 = smul.addr %s597, 8
        %s599 = scalar_lea.vmem %s3, %s598
        %p600 = pneg %p150
        %p601 = pneg %p147
        %p602 = scmp.lt.s32.totalorder %s39, 1
        %s603 = scalar_select %p602, %s39, 1
        %s604 = scalar_lea.vmem %s4, %s603
        %p605 = pneg %p176
        %p606 = pneg %p173
        %p607 = pneg %p197
        %p608 = pneg %p194
        %p609 = pneg %p218
        %p610 = pneg %p215
        %p611 = pneg %p239
        %p612 = pneg %p236
        %p613 = pneg %p260
        %p614 = pneg %p257
        %p615 = pneg %p281
        %p616 = pneg %p278
        %p617 = pneg %p302
        %p618 = pneg %p299
        %p619 = pneg %p323
        %p620 = pneg %p320
        %p621 = pneg %p344
        %p622 = pneg %p341
        %p623 = pneg %p372
        %p624 = pneg %p369
        %s625 = sand.u32 %s359, 1
        %s626 = scalar_lea.sflag [#allocation4], %s625
        %s627 = sand.u32 %s359, 1
        %s628 = smul.addr %s627, 8
        %s629 = scalar_lea.vmem [#allocation13], %s628
        %p630 = scmp.lt.s32.totalorder %s39, 1
        %s631 = scalar_select %p630, %s39, 1
        %p632 = scmp.lt.s32.totalorder %s40, 0
        %s633 = scalar_select %p632, %s40, 0
        %s634 = sadd.s32 %s633, %s631
        %s635 = smul.addr %s634, 8
        %s636 = scalar_lea.vmem %s0, %s635
        %p637 = scmp.lt.s32.totalorder %s39, 1
        %s638 = scalar_select %p637, %s39, 1
        %p639 = scmp.lt.s32.totalorder %s40, 0
        %s640 = scalar_select %p639, %s40, 0
        %s641 = sadd.s32 %s640, %s638
        %s642 = smul.addr %s641, 8
        %s643 = scalar_lea.vmem %s3, %s642
        %p644 = scmp.lt.s32.totalorder %s39, 1
        %s645 = scalar_select %p644, %s39, 1
        %s646 = scalar_lea.vmem %s4, %s645
        %v647 = vld [vmem:[%s636] sm:$0xff]
        %v648 = vld [vmem:[%s534] sm:$0xff]
        %v649 = vld [vmem:[%s544] sm:$0xff]
        %v650 = vld [vmem:[#allocation7] sm:$0xff]
        %v651 = vld [vmem:[#allocation7 + $0x8] sm:$0xff]
        %v652 = vld [vmem:[%s6] sm:$0x1]
        %v654 = vperm.slane %v652, 0
        %vm656 = vcmask 130048
        %v658 = vsel %vm656, %v647, 0
        %660 = vmatpush.msra.mxu0 0.0
        %661 = vmatpush.msra.mxu0 0.0
        %662 = vmatpush.msra.mxu0 0.0
        %663 = vmatpush.msra.mxu0 0.0
        %664 = vmatpush.msra.mxu0 0.0
        %665 = vmatpush.msra.mxu0 0.0
        %666 = vmatpush.msra.mxu0 0.0
        %667 = vmatpush.msra.mxu0 0.0
        %668 = vmatpush.msra.mxu0 0.0
        %669 = vmatpush.msra.mxu0 0.0
        %670 = vmatpush.msra.mxu0 0.0
        %671 = vmatpush.msra.mxu0 0.0
        %672 = vmatpush.msra.mxu0 0.0
        %673 = vmatpush.msra.mxu0 0.0
        %674 = vmatpush.msra.mxu0 %v651
        %675 = vmatpush.msra.mxu0 %v650
        %676 = vmatmul.f32.gmra.mxu0 %v658
        %v677 = vpop.f32.mrf.mxu0
        %v678 = vadd.f32 %v654, %v677
        %679 = vdwg.mxu0
        %v680 = vld [vmem:[#allocation8] sm:$0xff]
        %v681 = vld [vmem:[#allocation8 + $0x8] sm:$0xff]
        %v682 = vld [vmem:[%s8] sm:$0x1]
        %v684 = vperm.slane %v682, 0
        %v687 = vsel %vm656, %v648, 0
        %689 = vmatpush.msra.mxu0 0.0
        %690 = vmatpush.msra.mxu0 0.0
        %691 = vmatpush.msra.mxu0 0.0
        %692 = vmatpush.msra.mxu0 0.0
        %693 = vmatpush.msra.mxu0 0.0
        %694 = vmatpush.msra.mxu0 0.0
        %695 = vmatpush.msra.mxu0 0.0
        %696 = vmatpush.msra.mxu0 0.0
        %697 = vmatpush.msra.mxu0 0.0
        %698 = vmatpush.msra.mxu0 0.0
        %699 = vmatpush.msra.mxu0 0.0
        %700 = vmatpush.msra.mxu0 0.0
        %701 = vmatpush.msra.mxu0 0.0
        %702 = vmatpush.msra.mxu0 0.0
        %703 = vmatpush.msra.mxu0 %v681
        %704 = vmatpush.msra.mxu0 %v680
        %705 = vmatmul.f32.gmra.mxu0 %v687
        %v706 = vpop.f32.mrf.mxu0
        %v707 = vadd.f32 %v684, %v706
        %708 = vdwg.mxu0
        %v709 = vld [vmem:[#allocation10] sm:$0xff]
        %v710 = vld [vmem:[#allocation10 + $0x8] sm:$0xff]
        %v711 = vld [vmem:[%s10] sm:$0x1]
        %v713 = vperm.slane %v711, 0
        %v716 = vsel %vm656, %v649, 0
        %718 = vmatpush.msra.mxu0 0.0
        %719 = vmatpush.msra.mxu0 0.0
        %720 = vmatpush.msra.mxu0 0.0
        %721 = vmatpush.msra.mxu0 0.0
        %722 = vmatpush.msra.mxu0 0.0
        %723 = vmatpush.msra.mxu0 0.0
        %724 = vmatpush.msra.mxu0 0.0
        %725 = vmatpush.msra.mxu0 0.0
        %726 = vmatpush.msra.mxu0 0.0
        %727 = vmatpush.msra.mxu0 0.0
        %728 = vmatpush.msra.mxu0 0.0
        %729 = vmatpush.msra.mxu0 0.0
        %730 = vmatpush.msra.mxu0 0.0
        %731 = vmatpush.msra.mxu0 0.0
        %732 = vmatpush.msra.mxu0 %v710
        %733 = vmatpush.msra.mxu0 %v709
        %734 = vmatmul.f32.gmra.mxu0 %v716
        %v735 = vpop.f32.mrf.mxu0
        %v736 = vadd.f32 %v713, %v735
        %737 = vdwg.mxu0
        %v738 = vld [vmem:[%s643] sm:$0xff]
        %v739 = vld [vmem:[%s646] sm:$0x1]
        %741 = vset.pattern.permute.xlu0 0
        %742 = vperm.xlu0 %741, %v738
        %v743 = vpop.permute.xlu0 %742
        %v746 = vperm.slane %v739, 0
        %v748 = vmul.f32 %v743, %v746
        %vm749 = vcmask 261120
        %v751 = vsel %vm749, %v678, 0
        %v754 = vsel %vm749, %v707, 0
        %756 = vmatpush.xpose.msra.mxu0 0.0
        %757 = vmatpush.xpose.msra.mxu0 0.0
        %758 = vmatpush.xpose.msra.mxu0 0.0
        %759 = vmatpush.xpose.msra.mxu0 0.0
        %760 = vmatpush.xpose.msra.mxu0 0.0
        %761 = vmatpush.xpose.msra.mxu0 0.0
        %762 = vmatpush.xpose.msra.mxu0 0.0
        %763 = vmatpush.xpose.msra.mxu0 0.0
        %764 = vmatpush.xpose.msra.mxu0 0.0
        %765 = vmatpush.xpose.msra.mxu0 0.0
        %766 = vmatpush.xpose.msra.mxu0 0.0
        %767 = vmatpush.xpose.msra.mxu0 0.0
        %768 = vmatpush.xpose.msra.mxu0 0.0
        %769 = vmatpush.xpose.msra.mxu0 0.0
        %770 = vmatpush.xpose.msra.mxu0 0.0
        %771 = vmatpush.xpose.msra.mxu0 %v754
        %772 = vmatmul.f32.gmra.mxu0 %v751
        %v773 = vpop.f32.mrf.mxu0
        %v774 = vadd.f32 0.0, %v773
        %775 = vdwg.mxu0
        %v776 = vmul.f32 %v774, 0.17677669
        %v777 = vmul.f32 %v776, %v748
        %vm778 = vcmask 64512
        %v779 = vsel %vm778, %v777, -inf
        %780 = vmax.xlane.f32.xlu0 %v779
        %v781 = vpop.xlane.xlu0 %780
        %v782 = vsub.f32 %v777, %v781
        %v783 = vmul.f32 %v782, 1.442695
        %v784 = vpow.pop %v783
        %v785 = vmul.f32 %v784, %v748
        %v786 = vsel %vm778, %v785, 0.0
        %787 = vadd.xlane.f32.xlu0 %v786
        %v788 = vpop.xlane.xlu0 %787
        %v789 = vsel %vm778, %v784, 0.0
        %790 = vadd.xlane.f32.xlu0 %v789
        %v791 = vpop.xlane.xlu0 %790
        %v792 = vmul.f32 %v791, 1e-13
        %v793 = vadd.f32 %v788, %v792
        %v794 = vrcp.pop %v793
        %v795 = vmul.f32 %v793, %v794
        %v796 = vsub.f32 1.0, %v795
        %v797 = vmul.f32 %v794, %v796
        %v798 = vadd.f32 %v794, %v797
        %vm799 = vweird.f32 %v793
        %vm800 = vweird.f32 %v794
        %vm801 = vmor %vm799, %vm800
        %v802 = vsel %vm801, %v794, %v798
        %v803 = vand.u32 2147483647, %v793
        %vm804 = vcmp.eq.f32.partialorder %v803, 8.507059e+37
        %v805 = vand.u32 %v793, 2147483648
        %v806 = vor.u32 1.1754944e-38, %v805
        %v807 = vsel %vm804, %v806, %v802
        %v808 = vmul.f32 %v785, %v807
        %v810 = vsel %vm778, %v808, 0
        %812 = vmatpush.msra.mxu0 0.0
        %813 = vmatpush.msra.mxu0 0.0
        %814 = vmatpush.msra.mxu0 0.0
        %815 = vmatpush.msra.mxu0 0.0
        %816 = vmatpush.msra.mxu0 0.0
        %817 = vmatpush.msra.mxu0 0.0
        %818 = vmatpush.msra.mxu0 0.0
        %819 = vmatpush.msra.mxu0 0.0
        %820 = vmatpush.msra.mxu0 0.0
        %821 = vmatpush.msra.mxu0 0.0
        %822 = vmatpush.msra.mxu0 0.0
        %823 = vmatpush.msra.mxu0 0.0
        %824 = vmatpush.msra.mxu0 0.0
        %825 = vmatpush.msra.mxu0 0.0
        %826 = vmatpush.msra.mxu0 0.0
        %827 = vmatpush.msra.mxu0 %v736
        %828 = vmatmul.f32.gmra.mxu0 %v810
        %v829 = vpop.f32.mrf.mxu0
        %v830 = vadd.f32 0.0, %v829
        %831 = vdwg.mxu0
        %832 = vrot.lane.b32.xlu0 %v678, 96
        %v833 = vpop.permute.xlu0 %832
        %834 = vrot.lane.b32.xlu0 %v707, 96
        %v835 = vpop.permute.xlu0 %834
        %v836 = vsel %vm749, %v833, 0
        %v838 = vsel %vm749, %v835, 0
        %840 = vmatpush.xpose.msra.mxu0 0.0
        %841 = vmatpush.xpose.msra.mxu0 0.0
        %842 = vmatpush.xpose.msra.mxu0 0.0
        %843 = vmatpush.xpose.msra.mxu0 0.0
        %844 = vmatpush.xpose.msra.mxu0 0.0
        %845 = vmatpush.xpose.msra.mxu0 0.0
        %846 = vmatpush.xpose.msra.mxu0 0.0
        %847 = vmatpush.xpose.msra.mxu0 0.0
        %848 = vmatpush.xpose.msra.mxu0 0.0
        %849 = vmatpush.xpose.msra.mxu0 0.0
        %850 = vmatpush.xpose.msra.mxu0 0.0
        %851 = vmatpush.xpose.msra.mxu0 0.0
        %852 = vmatpush.xpose.msra.mxu0 0.0
        %853 = vmatpush.xpose.msra.mxu0 0.0
        %854 = vmatpush.xpose.msra.mxu0 0.0
        %855 = vmatpush.xpose.msra.mxu0 %v838
        %856 = vmatmul.f32.gmra.mxu0 %v836
        %v857 = vpop.f32.mrf.mxu0
        %v858 = vadd.f32 0.0, %v857
        %859 = vdwg.mxu0
        %v860 = vmul.f32 %v858, 0.17677669
        %v861 = vmul.f32 %v860, %v748
        %v862 = vsel %vm778, %v861, -inf
        %863 = vmax.xlane.f32.xlu0 %v862
        %v864 = vpop.xlane.xlu0 %863
        %v865 = vsub.f32 %v861, %v864
        %v866 = vmul.f32 %v865, 1.442695
        %v867 = vpow.pop %v866
        %v868 = vmul.f32 %v867, %v748
        %v869 = vsel %vm778, %v868, 0.0
        %870 = vadd.xlane.f32.xlu0 %v869
        %v871 = vpop.xlane.xlu0 %870
        %v872 = vsel %vm778, %v867, 0.0
        %873 = vadd.xlane.f32.xlu0 %v872
        %v874 = vpop.xlane.xlu0 %873
        %v875 = vmul.f32 %v874, 1e-13
        %v876 = vadd.f32 %v871, %v875
        %v877 = vrcp.pop %v876
        %v878 = vmul.f32 %v876, %v877
        %v879 = vsub.f32 1.0, %v878
        %v880 = vmul.f32 %v877, %v879
        %v881 = vadd.f32 %v877, %v880
        %vm882 = vweird.f32 %v876
        %vm883 = vweird.f32 %v877
        %vm884 = vmor %vm882, %vm883
        %v885 = vsel %vm884, %v877, %v881
        %v886 = vand.u32 2147483647, %v876
        %vm887 = vcmp.eq.f32.partialorder %v886, 8.507059e+37
        %v888 = vand.u32 %v876, 2147483648
        %v889 = vor.u32 1.1754944e-38, %v888
        %v890 = vsel %vm887, %v889, %v885
        %v891 = vmul.f32 %v868, %v890
        %893 = vrot.lane.b32.xlu0 %v736, 96
        %v894 = vpop.permute.xlu0 %893
        %v897 = vsel %vm778, %v891, 0
        %899 = vmatpush.msra.mxu0 0.0
        %900 = vmatpush.msra.mxu0 0.0
        %901 = vmatpush.msra.mxu0 0.0
        %902 = vmatpush.msra.mxu0 0.0
        %903 = vmatpush.msra.mxu0 0.0
        %904 = vmatpush.msra.mxu0 0.0
        %905 = vmatpush.msra.mxu0 0.0
        %906 = vmatpush.msra.mxu0 0.0
        %907 = vmatpush.msra.mxu0 0.0
        %908 = vmatpush.msra.mxu0 0.0
        %909 = vmatpush.msra.mxu0 0.0
        %910 = vmatpush.msra.mxu0 0.0
        %911 = vmatpush.msra.mxu0 0.0
        %912 = vmatpush.msra.mxu0 0.0
        %913 = vmatpush.msra.mxu0 0.0
        %914 = vmatpush.msra.mxu0 %v894
        %915 = vmatmul.f32.gmra.mxu0 %v897
        %v916 = vpop.f32.mrf.mxu0
        %v917 = vadd.f32 0.0, %v916
        %918 = vdwg.mxu0
        %919 = vrot.lane.b32.xlu0 %v678, 64
        %v920 = vpop.permute.xlu0 %919
        %921 = vrot.lane.b32.xlu0 %v707, 64
        %v922 = vpop.permute.xlu0 %921
        %v923 = vsel %vm749, %v920, 0
        %v925 = vsel %vm749, %v922, 0
        %927 = vmatpush.xpose.msra.mxu0 0.0
        %928 = vmatpush.xpose.msra.mxu0 0.0
        %929 = vmatpush.xpose.msra.mxu0 0.0
        %930 = vmatpush.xpose.msra.mxu0 0.0
        %931 = vmatpush.xpose.msra.mxu0 0.0
        %932 = vmatpush.xpose.msra.mxu0 0.0
        %933 = vmatpush.xpose.msra.mxu0 0.0
        %934 = vmatpush.xpose.msra.mxu0 0.0
        %935 = vmatpush.xpose.msra.mxu0 0.0
        %936 = vmatpush.xpose.msra.mxu0 0.0
        %937 = vmatpush.xpose.msra.mxu0 0.0
        %938 = vmatpush.xpose.msra.mxu0 0.0
        %939 = vmatpush.xpose.msra.mxu0 0.0
        %940 = vmatpush.xpose.msra.mxu0 0.0
        %941 = vmatpush.xpose.msra.mxu0 0.0
        %942 = vmatpush.xpose.msra.mxu0 %v925
        %943 = vmatmul.f32.gmra.mxu0 %v923
        %v944 = vpop.f32.mrf.mxu0
        %v945 = vadd.f32 0.0, %v944
        %946 = vdwg.mxu0
        %v947 = vmul.f32 %v945, 0.17677669
        %v948 = vmul.f32 %v947, %v748
        %v949 = vsel %vm778, %v948, -inf
        %950 = vmax.xlane.f32.xlu0 %v949
        %v951 = vpop.xlane.xlu0 %950
        %v952 = vsub.f32 %v948, %v951
        %v953 = vmul.f32 %v952, 1.442695
        %v954 = vpow.pop %v953
        %v955 = vmul.f32 %v954, %v748
        %v956 = vsel %vm778, %v955, 0.0
        %957 = vadd.xlane.f32.xlu0 %v956
        %v958 = vpop.xlane.xlu0 %957
        %v959 = vsel %vm778, %v954, 0.0
        %960 = vadd.xlane.f32.xlu0 %v959
        %v961 = vpop.xlane.xlu0 %960
        %v962 = vmul.f32 %v961, 1e-13
        %v963 = vadd.f32 %v958, %v962
        %v964 = vrcp.pop %v963
        %v965 = vmul.f32 %v963, %v964
        %v966 = vsub.f32 1.0, %v965
        %v967 = vmul.f32 %v964, %v966
        %v968 = vadd.f32 %v964, %v967
        %vm969 = vweird.f32 %v963
        %vm970 = vweird.f32 %v964
        %vm971 = vmor %vm969, %vm970
        %v972 = vsel %vm971, %v964, %v968
        %v973 = vand.u32 2147483647, %v963
        %vm974 = vcmp.eq.f32.partialorder %v973, 8.507059e+37
        %v975 = vand.u32 %v963, 2147483648
        %v976 = vor.u32 1.1754944e-38, %v975
        %v977 = vsel %vm974, %v976, %v972
        %v978 = vmul.f32 %v955, %v977
        %979 = vrot.lane.b32.xlu0 %v736, 64
        %v980 = vpop.permute.xlu0 %979
        %v983 = vsel %vm778, %v978, 0
        %985 = vmatpush.msra.mxu0 0.0
        %986 = vmatpush.msra.mxu0 0.0
        %987 = vmatpush.msra.mxu0 0.0
        %988 = vmatpush.msra.mxu0 0.0
        %989 = vmatpush.msra.mxu0 0.0
        %990 = vmatpush.msra.mxu0 0.0
        %991 = vmatpush.msra.mxu0 0.0
        %992 = vmatpush.msra.mxu0 0.0
        %993 = vmatpush.msra.mxu0 0.0
        %994 = vmatpush.msra.mxu0 0.0
        %995 = vmatpush.msra.mxu0 0.0
        %996 = vmatpush.msra.mxu0 0.0
        %997 = vmatpush.msra.mxu0 0.0
        %998 = vmatpush.msra.mxu0 0.0
        %999 = vmatpush.msra.mxu0 0.0
        %1000 = vmatpush.msra.mxu0 %v980
        %1001 = vmatmul.f32.gmra.mxu0 %v983
        %v1002 = vpop.f32.mrf.mxu0
        %v1003 = vadd.f32 0.0, %v1002
        %1004 = vdwg.mxu0
        %1006 = vrot.lane.b32.xlu0 %v917, 32
        %v1007 = vpop.permute.xlu0 %1006
        %1010 = vrot.lane.b32.xlu0 %v1003, 64
        %v1011 = vpop.permute.xlu0 %1010
        %v1013 = vsel %vm749, %v830, %v1007
        %vm1014 = vcmask 523264
        %v1015 = vsel %vm1014, %v1013, %v1011
        %v1016 = vld [vmem:[#allocation11] sm:$0xff]
        %v1017 = vld [vmem:[#allocation11 + $0x8] sm:$0xff]
        %v1018 = vld [vmem:[#allocation11 + $0x10] sm:$0xff]
        %v1019 = vld [vmem:[#allocation11 + $0x18] sm:$0xff]
        %v1020 = vld [vmem:[#allocation11 + $0x20] sm:$0xff]
        %v1021 = vld [vmem:[#allocation11 + $0x28] sm:$0xff]
        %v1022 = vld [vmem:[#allocation11 + $0x30] sm:$0xff]
        %v1023 = vld [vmem:[#allocation11 + $0x38] sm:$0xff]
        %v1024 = vld [vmem:[#allocation11 + $0x40] sm:$0xff]
        %v1025 = vld [vmem:[#allocation11 + $0x48] sm:$0xff]
        %v1026 = vld [vmem:[#allocation11 + $0x50] sm:$0xff]
        %v1027 = vld [vmem:[#allocation11 + $0x58] sm:$0xff]
        %v1028 = vld [vmem:[%s12] sm:$0x1]
        %v1030 = vperm.slane %v1028, 0
        %vm1032 = vcmask 785408
        %v1034 = vsel %vm1032, %v1015, 0
        %1036 = vmatpush.msra.mxu0 0.0
        %1037 = vmatpush.msra.mxu0 0.0
        %1038 = vmatpush.msra.mxu0 0.0
        %1039 = vmatpush.msra.mxu0 0.0
        %1040 = vmatpush.msra.mxu0 %v1027
        %1041 = vmatpush.msra.mxu0 %v1026
        %1042 = vmatpush.msra.mxu0 %v1025
        %1043 = vmatpush.msra.mxu0 %v1024
        %1044 = vmatpush.msra.mxu0 %v1023
        %1045 = vmatpush.msra.mxu0 %v1022
        %1046 = vmatpush.msra.mxu0 %v1021
        %1047 = vmatpush.msra.mxu0 %v1020
        %1048 = vmatpush.msra.mxu0 %v1019
        %1049 = vmatpush.msra.mxu0 %v1018
        %1050 = vmatpush.msra.mxu0 %v1017
        %1051 = vmatpush.msra.mxu0 %v1016
        %1052 = vmatmul.f32.gmra.mxu0 %v1034
        %v1053 = vpop.f32.mrf.mxu0
        %v1054 = vadd.f32 %v1030, %v1053
        %1055 = vdwg.mxu0
        %1056 = vst [vmem:[%s629] sm:$0xff] %v1054
        %s1057 = sand.u32 %s359, 1
        %s1058 = scalar_lea.sflag [#allocation4], %s1057
        %s1059 = sand.u32 %s359, 1
        %s1060 = smul.addr %s1059, 8
        %s1061 = scalar_lea.vmem [#allocation13], %s1060
        // Predicated region
        $region97: #{tpu_custom_call.1} parent=71 // pred_check
          %p1062 = pneg %p369
        $region98: #{tpu_custom_call.1} parent=71 // pred_check_branch
          %1064 = sbr.rel (%p1062) target = $region100
        $region99: #{tpu_custom_call.1} parent=71 // pred_region
          %1066 = vsyncadd %s1058, 0
          %s1067 = sadd.s32 %s40, %s39
          %s1068 = smul.addr %s1067, 8
          %s1069 = scalar_lea.hbm %s13, %s1068
          %s1071 = sshll.u32 %s1061, 4
          %s1072 = int_to_ptr.vmem [resolvable:$true] %s1071
          %s1073 = sshll.u32 %s1069, 4
          %s1074 = int_to_ptr.hbm [resolvable:$true] %s1073
          %1076 = dma.vmem_to_hbm [thread:$0]  %s1072, 128, %s1074, %s1058
        $region100: #{tpu_custom_call.1} parent=71 // pred_fallthru
          _
      $region72: #{tpu_custom_call.1} parent=5 // pred_fallthru
        _
      %p1077 = scmp.le.s32.totalorder 2, %s30
      // Predicated region
      $region101: #{tpu_custom_call.1} parent=5 // pred_check
        %p1078 = pneg %p1077
      $region102: #{tpu_custom_call.1} parent=5 // pred_check_branch
        %1080 = sbr.rel (%p1078) target = $region104
      $region103: #{tpu_custom_call.1} parent=5 // pred_region
        %s1081 = ssub.s32 %s30, 2
        // Predicated region
        $region105: #{tpu_custom_call.1} parent=103 // pred_check
          %p1082 = pneg %p375
        $region106: #{tpu_custom_call.1} parent=103 // pred_check_branch
          %1084 = sbr.rel (%p1082) target = $region108
        $region107: #{tpu_custom_call.1} parent=103 // pred_region
          %s1085 = sand.u32 %s360, 1
          %s1086 = scalar_lea.sflag [#allocation4], %s1085
          %s1087 = sand.u32 %s360, 1
          %s1088 = smul.addr %s1087, 8
          %s1089 = scalar_lea.vmem [#allocation13], %s1088
          %1091 = dma.done %s1086, 128
        $region108: #{tpu_custom_call.1} parent=103 // pred_fallthru
          _
      $region104: #{tpu_custom_call.1} parent=5 // pred_fallthru
        _
    $region6: #{tpu_custom_call.1} parent=1 // loop_footer
      %s34 = sadd.s32 1, %s30
    $region7: #{tpu_custom_call.1} parent=1 // loop_footer_branch
      %29 = sbr.rel target = $region3
    $region8: #{tpu_custom_call.1} parent=1 // loop_exit
      _
    %1092 = vsyncpa [#allocation3], 1
    %s1093 = scalar_lea.sflag [#allocation3], 1
    %1094 = vsyncpa %s1093, 1
    %1095 = vsyncpa [#allocation6], 1
    %s1096 = scalar_lea.sflag [#allocation6], 1
    %1097 = vsyncpa %s1096, 1
    %1098 = vsyncpa [#allocation9], 1
    %1099 = vsyncpa [#allocation12], 1
    %1100 = vsyncpa [#allocation4], 1
    %s1101 = scalar_lea.sflag [#allocation4], 1
    %1102 = vsyncpa %s1101, 1

</llo_original>
